<compile_context>
chip_gen: v7x
topology: tpu7x:2x2x1
jax: 0.10.0
libtpu: 0.0.40
codegen_flags: <defaults>
</compile_context>

<pallas_src>
import functools

import jax
import jax.numpy as jnp
from jax.experimental import pallas as pl
from jax.experimental.pallas import tpu as pltpu

NF = 32            # n_filters
IN_CH = 6          # in_channels
IN_CH_PAD = 8      # input channels zero-padded to a sublane multiple
BN_EPS = 1e-5
NROWS = NF         # rows of the packed weight slab (max Cout)
COL_ROWS = 256     # scratch rows: decoder-0 needs 192 data rows + a bias row
DT = jnp.bfloat16  # MXU operand dtype

# (kernel_size, dilation, cin_store, cout) per conv+BN+ReLU stage, forward order.
LAYERS = [
    (3, 1, IN_CH_PAD, NF),   # 0  encoder 0 (in channels padded 6 -> 8)
    (3, 1, NF, NF),          # 1  encoder 1
    (3, 1, NF, NF),          # 2  encoder 2
    (3, 1, NF, NF),          # 3  encoder 3
    (1, 1, NF, NF),          # 4  aspp1 (1x1)
    (3, 6, NF, NF),          # 5  aspp2 (dil 6)
    (3, 12, NF, NF),         # 6  aspp3 (dil 12)
    (3, 18, NF, NF),         # 7  aspp4 (dil 18)
    (3, 24, NF, NF),         # 8  aspp5 (dil 24)
    (1, 1, NF, NF),          # 9  aspp global-avg-pool 1x1 conv
    (1, 1, 6 * NF, NF),      # 10 decoder 0 (1x1 over channel concat)
    (3, 1, NF, NF // 2),     # 11 decoder 1
    (1, 1, NF // 2, 1),      # 12 decoder 2
]
# real (unpadded) in-channel counts, for weight init / reference
REAL_CIN = [IN_CH, NF, NF, NF, NF, NF, NF, NF, NF, NF, 6 * NF, NF, NF // 2]

# lane-aligned weight-slab layout: one 128-wide block per layer (256 for decoder-0)
WIDTH = [256 if i == 10 else 128 for i in range(len(LAYERS))]
COL_OFF = []
_o = 0
for _w in WIDTH:
    COL_OFF.append(_o)
    _o += _w
TOTW = _o                                   # 1792 columns
BIAS_COL = [192 if i == 10 else 127 for i in range(len(LAYERS))]

# the only shift offsets used by the dilated taps (masks precomputed in the wrapper)
SHIFT_OFFS = (-24, -18, -12, -6, -1, 1, 6, 12, 18, 24)


def deeplab_kernel(mask_ref, e_ref, et_ref, x_ref, w_ref, out_ref, col_ref, *, L, bt):
    """mask_ref: (10, N) f32   e_ref: (Ep, N) bf16 one-hot sample map
       et_ref: (N, Ep) bf16    x_ref: (8, N) bf16   w_ref: (32, TOTW) bf16
       out_ref: (1, N) f32     col_ref: (256, N) bf16 im2col / concat scratch.
       N = bt * L (bt samples stacked along lanes)."""
    N = bt * L

    def mask(off):
        r = SHIFT_OFFS.index(off)
        return mask_ref[r:r + 1, :]                       # (1, N) f32, hoisted constant

    def shifted(h, off):
        # s[:, t] = h[:, t + off] inside the sample, 0 outside ('same' zero pad;
        # the mask also kills cross-sample leakage from the lane roll).
        rolled = pltpu.roll(h, (-off) % N, 1)             # XLU lane rotate
        return rolled * mask(off)

    def conv_bn_relu(h, i):
        """h: (cin_store, N) f32 -> (cout, N) f32.  BN scale is folded into the
        weights; BN shift rides on the constant-1.0 scratch row (col 127)."""
        K, dil, cin, cout = LAYERS[i]
        if K == 3:
            col_ref[0:cin, :] = shifted(h, -dil).astype(DT)          # tap k=0
            col_ref[cin:2 * cin, :] = h.astype(DT)                   # tap k=1
            col_ref[2 * cin:3 * cin, :] = shifted(h, dil).astype(DT)  # tap k=2
        else:
            col_ref[0:cin, :] = h.astype(DT)
        off = COL_OFF[i]
        cr = (cout + 7) // 8 * 8                          # padded rows are zero in the slab
        w = w_ref[0:cr, off:off + 128]                    # full 128-lane block
        y = jnp.dot(w, col_ref[0:128, :], preferred_element_type=jnp.float32)
        y = jnp.maximum(y, 0.0)                           # ReLU (Dropout = identity, eval)
        return y[0:cout] if cr != cout else y

    # ---- per-step scratch init: zero the pad rows, set the two constant-1 bias rows.
    # (done every step so the kernel is safe when grid steps are split across cores)
    col_ref[...] = jnp.zeros((COL_ROWS, N), DT)
    col_ref[127:128, :] = jnp.ones((1, N), DT)
    col_ref[192:193, :] = jnp.ones((1, N), DT)

    # ---- encoder: 4 x (conv3 -> BN -> ReLU), res=False ----
    h = x_ref[...].astype(jnp.float32)                    # (8, N)
    for i in range(4):
        h = conv_bn_relu(h, i)                            # (32, N)

    # ---- ASPP branches 1..5 (concat order) ----
    branches = [conv_bn_relu(h, 4 + j) for j in range(5)]

    # ---- ASPP global-average-pool branch: per-sample mean -> 1x1 conv -> BN -> ReLU ----
    e = e_ref[...]                                        # (Ep, N) one-hot sample map
    h_bf = h.astype(DT)
    pooled = jnp.dot(h_bf, et_ref[...], preferred_element_type=jnp.float32) * (1.0 / L)  # (32, Ep)
    off9 = COL_OFF[9]
    w9 = w_ref[0:NF, off9:off9 + NF]                      # (32, 32)
    b9 = w_ref[0:NF, off9 + BIAS_COL[9]:off9 + BIAS_COL[9] + 1].astype(jnp.float32)
    g = jnp.maximum(
        jnp.dot(w9, pooled.astype(DT), preferred_element_type=jnp.float32) + b9, 0.0)    # (32, Ep)
    g_full = jnp.dot(g.astype(DT), e, preferred_element_type=jnp.float32)                # (32, N)

    # ---- decoder 0: single (32, 256) x (256, N) dot over the channel concat ----
    for j in range(5):
        col_ref[j * NF:(j + 1) * NF, :] = branches[j].astype(DT)
    col_ref[5 * NF:6 * NF, :] = g_full.astype(DT)
    w10 = w_ref[0:NF, COL_OFF[10]:COL_OFF[10] + 256]      # bias at relative col 192
    d = jnp.maximum(jnp.dot(w10, col_ref[...], preferred_element_type=jnp.float32), 0.0)
    col_ref[127:128, :] = jnp.ones((1, N), DT)            # restore bias row clobbered by concat

    # ---- decoder 1 & 2, final Sigmoid ----
    d = conv_bn_relu(d, 11)                               # (16, N)
    d = conv_bn_relu(d, 12)                               # (1, N)
    out_ref[...] = jax.nn.sigmoid(d).astype(out_ref.dtype)   # lane-dense (1, N) store


def init_params(key):
    """Deterministic synthetic weights, PyTorch layout (Cout, Cin, K), plus BN
    running-stat scale/shift."""
    params = []
    for i, (K, _dil, _cs, cout) in enumerate(LAYERS):
        cin = REAL_CIN[i]
        key, kw, kg, kb, km, kv = jax.random.split(key, 6)
        w = jax.random.normal(kw, (cout, cin, K), jnp.float32) / jnp.sqrt(cin * K)
        gamma = 1.0 + 0.05 * jax.random.normal(kg, (cout,), jnp.float32)
        beta = 0.05 * jax.random.normal(kb, (cout,), jnp.float32)
        rmean = 0.05 * jax.random.normal(km, (cout,), jnp.float32)
        rvar = 1.0 + 0.1 * jax.random.uniform(kv, (cout,), jnp.float32)
        scale = gamma / jnp.sqrt(rvar + BN_EPS)
        shift = beta - rmean * scale
        params.append((w, scale, shift))
    return params


def pack_params(params):
    """Fold BN scale (f32) into the conv weights, stash the BN shift in the block's
    bias column, pack into one (32, TOTW) slab and only then cast to bf16."""
    wall = jnp.zeros((NROWS, TOTW), jnp.float32)
    for i, ((K, _dil, cin_s, cout), (w, scale, shift)) in enumerate(zip(LAYERS, params)):
        cin = REAL_CIN[i]
        # (Cout, Cin, K) -> (Cout, K, cin_store) so column index = k*cin_store + c
        wm = jnp.zeros((cout, K, cin_s), jnp.float32)
        wm = wm.at[:, :, :cin].set(jnp.transpose(w, (0, 2, 1)))
        wm = wm.reshape(cout, K * cin_s) * scale[:, None]
        off = COL_OFF[i]
        wall = wall.at[0:cout, off:off + K * cin_s].set(wm)
        wall = wall.at[0:cout, off + BIAS_COL[i]].set(shift)
    return wall.astype(DT)


def deeplab1d_forward(x_ncl, wall, max_bt=16, max_cols=4096):
    B, C, L = x_ncl.shape
    assert C == IN_CH
    # TODO(synk): pad L to a lane multiple for general lengths; test uses L=128.
    assert L % 128 == 0, "kernel assumes the time axis is a multiple of 128"

    # samples per grid step: largest divisor of B within the column/VMEM budget that
    # still leaves >=2 grid steps when B >= 2 (so v7x's second TensorCore gets work).
    divs = [d for d in range(1, B + 1) if B % d == 0 and d <= max_bt and d * L <= max_cols]
    if not divs:
        divs = [1]
    pref = [d for d in divs if B // d >= 2]
    bt = max(pref) if pref else max(divs)
    n = bt * L
    e_rows = max(bt, 8)

    # lane-stacked input: (B, 6, L) -> zero-pad channels to 8 -> (8, B*L), bf16 DMA
    xp = jnp.pad(x_ncl, ((0, 0), (0, IN_CH_PAD - IN_CH), (0, 0)))
    x2 = jnp.transpose(xp, (1, 0, 2)).reshape(IN_CH_PAD, B * L).astype(DT)

    # hoisted per-block constants: 'same'-pad masks and the one-hot sample map
    tloc = jnp.tile(jnp.arange(L, dtype=jnp.int32), bt)           # per-sample local index
    sidx = jnp.repeat(jnp.arange(bt, dtype=jnp.int32), L)         # sample index per column
    masks = jnp.stack(
        [((tloc + o >= 0) & (tloc + o < L)).astype(jnp.float32) for o in SHIFT_OFFS])
    emat = (jnp.arange(e_rows, dtype=jnp.int32)[:, None] == sidx[None, :]).astype(DT)
    emat_t = jnp.transpose(emat)

    out = pl.pallas_call(
        functools.partial(deeplab_kernel, L=L, bt=bt),
        out_shape=jax.ShapeDtypeStruct((1, B * L), jnp.float32),
        grid=(B // bt,),
        in_specs=[
            pl.BlockSpec((len(SHIFT_OFFS), n), lambda b: (0, 0)),   # masks (constant)
            pl.BlockSpec((e_rows, n), lambda b: (0, 0)),            # one-hot sample map
            pl.BlockSpec((n, e_rows), lambda b: (0, 0)),            # its transpose
            pl.BlockSpec((IN_CH_PAD, n), lambda b: (0, b)),          # input slab
            pl.BlockSpec((NROWS, TOTW), lambda b: (0, 0)),           # packed weights
        ],
        out_specs=pl.BlockSpec((1, n), lambda b: (0, b)),
        scratch_shapes=[pltpu.VMEM((COL_ROWS, n), DT)],
        compiler_params=pltpu.CompilerParams(
            dimension_semantics=("parallel",),
        ),
    )(masks, emat, emat_t, x2, wall)
    return out.reshape(B, L)[:, None, :]                            # (B, 1, L), NCL


# ------------------------- pure-JAX reference (for checking) -------------------------
def _ref_forward(x_ncl, params):
    def conv_bn_relu(x, i):
        K, dil, _cs, _cout = LAYERS[i]
        w, scale, shift = params[i]                       # (Cout, Cin, K)
        pad = (K - 1) // 2 * dil
        y = jax.lax.conv_general_dilated(
            x, w, window_strides=(1,), padding=[(pad, pad)], rhs_dilation=(dil,),
            dimension_numbers=("NCH", "OIH", "NCH"))
        y = y * scale[None, :, None] + shift[None, :, None]
        return jnp.maximum(y, 0.0)

    h = x_ncl
    for i in range(4):
        h = conv_bn_relu(h, i)
    branches = [conv_bn_relu(h, 4 + j) for j in range(5)]
    pooled = jnp.mean(h, axis=2, keepdims=True)
    g = conv_bn_relu(pooled, 9)
    branches.append(jnp.broadcast_to(g, branches[0].shape))
    d = conv_bn_relu(jnp.concatenate(branches, axis=1), 10)
    d = conv_bn_relu(d, 11)
    d = conv_bn_relu(d, 12)
    return jax.nn.sigmoid(d)


if __name__ == "__main__":
    key = jax.random.PRNGKey(0)
    kx, kp = jax.random.split(key)
    B, L = 2, 128
    x = jax.random.normal(kx, (B, IN_CH, L), jnp.float32)
    params = init_params(kp)
    wall = pack_params(params)

    y = deeplab1d_forward(x, wall)
    jax.block_until_ready(y)

    assert y.shape == (B, 1, L)
    assert bool(jnp.all(jnp.isfinite(y)))
    assert bool(jnp.all((y >= 0.0) & (y <= 1.0)))         # sigmoid(ReLU(.)) in [0.5, 1)

    y_ref = _ref_forward(x, params)
    max_err = float(jnp.max(jnp.abs(y - y_ref)))
    assert max_err < 5e-2, f"mismatch vs reference: {max_err}"

    print("KERNEL_OK")
</pallas_src>

<mosaic_0001>
module attributes {stable_mosaic.version = 11 : i64} {
  func.func @deeplab_kernel(%arg0: i32, %arg1: memref<10x128xf32, #tpu.memory_space<vmem>>, %arg2: memref<8x128xbf16, #tpu.memory_space<vmem>>, %arg3: memref<128x8xbf16, #tpu.memory_space<vmem>>, %arg4: memref<8x128xbf16, #tpu.memory_space<vmem>>, %arg5: memref<32x1792xbf16, #tpu.memory_space<vmem>>, %arg6: memref<1x128xf32, #tpu.memory_space<vmem>>, %arg7: memref<256x128xbf16, #tpu.memory_space<vmem>>) attributes {dimension_semantics = [#tpu.dimension_semantics<parallel>], iteration_bounds = array<i64: 2>, scalar_prefetch = 0 : i64, scratch_operands = 1 : i64, tpu.core_type = #tpu.core_type<tc>, window_params = [{pipeline_mode = #tpu.pipeline_mode<synchronous>, transform_indices = @transform_0, window_bounds = array<i64: 10, 128>}, {pipeline_mode = #tpu.pipeline_mode<synchronous>, transform_indices = @transform_1, window_bounds = array<i64: 8, 128>}, {pipeline_mode = #tpu.pipeline_mode<synchronous>, transform_indices = @transform_2, window_bounds = array<i64: 128, 8>}, {transform_indices = @transform_3, window_bounds = array<i64: 8, 128>}, {pipeline_mode = #tpu.pipeline_mode<synchronous>, transform_indices = @transform_4, window_bounds = array<i64: 32, 1792>}, {transform_indices = @transform_5, window_bounds = array<i64: 1, 128>}]} {
    %cst = arith.constant 0.000000e+00 : bf16
    %0 = vector.broadcast %cst : bf16 to vector<256x128xbf16>
    %c0 = arith.constant 0 : index
    %c0_0 = arith.constant 0 : index
    %1 = vector.load %arg7[%c0, %c0_0] : memref<256x128xbf16, #tpu.memory_space<vmem>>, vector<256x128xbf16>
    tpu.vector_store %arg7[%c0, %c0_0], %0 {strides = array<i32>} : memref<256x128xbf16, #tpu.memory_space<vmem>>, vector<256x128xbf16>,
    %cst_1 = arith.constant 1.000000e+00 : bf16
    %2 = vector.broadcast %cst_1 : bf16 to vector<1x128xbf16>
    %c127 = arith.constant 127 : index
    %c0_2 = arith.constant 0 : index
    %3 = vector.load %arg7[%c127, %c0_2] : memref<256x128xbf16, #tpu.memory_space<vmem>>, vector<1x128xbf16>
    tpu.vector_store %arg7[%c127, %c0_2], %2 {strides = array<i32>} : memref<256x128xbf16, #tpu.memory_space<vmem>>, vector<1x128xbf16>,
    %cst_3 = arith.constant 1.000000e+00 : bf16
    %4 = vector.broadcast %cst_3 : bf16 to vector<1x128xbf16>
    %c192 = arith.constant 192 : index
    %c0_4 = arith.constant 0 : index
    %5 = vector.load %arg7[%c192, %c0_4] : memref<256x128xbf16, #tpu.memory_space<vmem>>, vector<1x128xbf16>
    tpu.vector_store %arg7[%c192, %c0_4], %4 {strides = array<i32>} : memref<256x128xbf16, #tpu.memory_space<vmem>>, vector<1x128xbf16>,
    %c0_5 = arith.constant 0 : index
    %c0_6 = arith.constant 0 : index
    %6 = vector.load %arg4[%c0_5, %c0_6] : memref<8x128xbf16, #tpu.memory_space<vmem>>, vector<8x128xbf16>
    %7 = arith.extf %6 : vector<8x128xbf16> to vector<8x128xf32>
    %c1_i32 = arith.constant 1 : i32
    %8 = tpu.dynamic_rotate %7 by %c1_i32 dim 1 : vector<8x128xf32>, i32 -> vector<8x128xf32>
    %c4 = arith.constant 4 : index
    %c0_7 = arith.constant 0 : index
    %9 = vector.load %arg1[%c4, %c0_7] : memref<10x128xf32, #tpu.memory_space<vmem>>, vector<1x128xf32>
    %10 = vector.broadcast %9 : vector<1x128xf32> to vector<8x128xf32>
    %11 = arith.mulf %8, %10 : vector<8x128xf32>
    %12 = arith.truncf %11 : vector<8x128xf32> to vector<8x128xbf16>
    %c0_8 = arith.constant 0 : index
    %c0_9 = arith.constant 0 : index
    %13 = vector.load %arg7[%c0_8, %c0_9] : memref<256x128xbf16, #tpu.memory_space<vmem>>, vector<8x128xbf16>
    tpu.vector_store %arg7[%c0_8, %c0_9], %12 {strides = array<i32>} : memref<256x128xbf16, #tpu.memory_space<vmem>>, vector<8x128xbf16>,
    %14 = arith.truncf %7 : vector<8x128xf32> to vector<8x128xbf16>
    %c8 = arith.constant 8 : index
    %c0_10 = arith.constant 0 : index
    %15 = vector.load %arg7[%c8, %c0_10] : memref<256x128xbf16, #tpu.memory_space<vmem>>, vector<8x128xbf16>
    tpu.vector_store %arg7[%c8, %c0_10], %14 {strides = array<i32>} : memref<256x128xbf16, #tpu.memory_space<vmem>>, vector<8x128xbf16>,
    %c127_i32 = arith.constant 127 : i32
    %16 = tpu.dynamic_rotate %7 by %c127_i32 dim 1 : vector<8x128xf32>, i32 -> vector<8x128xf32>
    %c5 = arith.constant 5 : index
    %c0_11 = arith.constant 0 : index
    %17 = vector.load %arg1[%c5, %c0_11] : memref<10x128xf32, #tpu.memory_space<vmem>>, vector<1x128xf32>
    %18 = vector.broadcast %17 : vector<1x128xf32> to vector<8x128xf32>
    %19 = arith.mulf %16, %18 : vector<8x128xf32>
    %20 = arith.truncf %19 : vector<8x128xf32> to vector<8x128xbf16>
    %c16 = arith.constant 16 : index
    %c0_12 = arith.constant 0 : index
    %21 = vector.load %arg7[%c16, %c0_12] : memref<256x128xbf16, #tpu.memory_space<vmem>>, vector<8x128xbf16>
    tpu.vector_store %arg7[%c16, %c0_12], %20 {strides = array<i32>} : memref<256x128xbf16, #tpu.memory_space<vmem>>, vector<8x128xbf16>,
    %c0_13 = arith.constant 0 : index
    %c0_14 = arith.constant 0 : index
    %22 = vector.load %arg5[%c0_13, %c0_14] : memref<32x1792xbf16, #tpu.memory_space<vmem>>, vector<32x128xbf16>
    %c0_15 = arith.constant 0 : index
    %c0_16 = arith.constant 0 : index
    %23 = vector.load %arg7[%c0_15, %c0_16] : memref<256x128xbf16, #tpu.memory_space<vmem>>, vector<128x128xbf16>
    %cst_17 = arith.constant dense<0.000000e+00> : vector<32x128xf32>
    %24 = tpu.matmul %22, %23, %cst_17 {dimension_numbers = #tpu.dot_dimension_numbers<[1], [0], [0], [1], [0, 0, 1, 1], [], []>} : vector<32x128xbf16>, vector<128x128xbf16>, vector<32x128xf32> -> vector<32x128xf32>
    %cst_18 = arith.constant 0.000000e+00 : f32
    %25 = vector.broadcast %cst_18 : f32 to vector<32x128xf32>
    %26 = arith.maximumf %24, %25 : vector<32x128xf32>
    %c1_i32_19 = arith.constant 1 : i32
    %27 = tpu.dynamic_rotate %26 by %c1_i32_19 dim 1 : vector<32x128xf32>, i32 -> vector<32x128xf32>
    %c4_20 = arith.constant 4 : index
    %c0_21 = arith.constant 0 : index
    %28 = vector.load %arg1[%c4_20, %c0_21] : memref<10x128xf32, #tpu.memory_space<vmem>>, vector<1x128xf32>
    %29 = vector.broadcast %28 : vector<1x128xf32> to vector<32x128xf32>
    %30 = arith.mulf %27, %29 : vector<32x128xf32>
    %31 = arith.truncf %30 : vector<32x128xf32> to vector<32x128xbf16>
    %c0_22 = arith.constant 0 : index
    %c0_23 = arith.constant 0 : index
    %32 = vector.load %arg7[%c0_22, %c0_23] : memref<256x128xbf16, #tpu.memory_space<vmem>>, vector<32x128xbf16>
    tpu.vector_store %arg7[%c0_22, %c0_23], %31 {strides = array<i32>} : memref<256x128xbf16, #tpu.memory_space<vmem>>, vector<32x128xbf16>,
    %33 = arith.truncf %26 : vector<32x128xf32> to vector<32x128xbf16>
    %c32 = arith.constant 32 : index
    %c0_24 = arith.constant 0 : index
    %34 = vector.load %arg7[%c32, %c0_24] : memref<256x128xbf16, #tpu.memory_space<vmem>>, vector<32x128xbf16>
    tpu.vector_store %arg7[%c32, %c0_24], %33 {strides = array<i32>} : memref<256x128xbf16, #tpu.memory_space<vmem>>, vector<32x128xbf16>,
    %c127_i32_25 = arith.constant 127 : i32
    %35 = tpu.dynamic_rotate %26 by %c127_i32_25 dim 1 : vector<32x128xf32>, i32 -> vector<32x128xf32>
    %c5_26 = arith.constant 5 : index
    %c0_27 = arith.constant 0 : index
    %36 = vector.load %arg1[%c5_26, %c0_27] : memref<10x128xf32, #tpu.memory_space<vmem>>, vector<1x128xf32>
    %37 = vector.broadcast %36 : vector<1x128xf32> to vector<32x128xf32>
    %38 = arith.mulf %35, %37 : vector<32x128xf32>
    %39 = arith.truncf %38 : vector<32x128xf32> to vector<32x128xbf16>
    %c64 = arith.constant 64 : index
    %c0_28 = arith.constant 0 : index
    %40 = vector.load %arg7[%c64, %c0_28] : memref<256x128xbf16, #tpu.memory_space<vmem>>, vector<32x128xbf16>
    tpu.vector_store %arg7[%c64, %c0_28], %39 {strides = array<i32>} : memref<256x128xbf16, #tpu.memory_space<vmem>>, vector<32x128xbf16>,
    %c0_29 = arith.constant 0 : index
    %c128 = arith.constant 128 : index
    %41 = vector.load %arg5[%c0_29, %c128] : memref<32x1792xbf16, #tpu.memory_space<vmem>>, vector<32x128xbf16>
    %c0_30 = arith.constant 0 : index
    %c0_31 = arith.constant 0 : index
    %42 = vector.load %arg7[%c0_30, %c0_31] : memref<256x128xbf16, #tpu.memory_space<vmem>>, vector<128x128xbf16>
    %cst_32 = arith.constant dense<0.000000e+00> : vector<32x128xf32>
    %43 = tpu.matmul %41, %42, %cst_32 {dimension_numbers = #tpu.dot_dimension_numbers<[1], [0], [0], [1], [0, 0, 1, 1], [], []>} : vector<32x128xbf16>, vector<128x128xbf16>, vector<32x128xf32> -> vector<32x128xf32>
    %cst_33 = arith.constant 0.000000e+00 : f32
    %44 = vector.broadcast %cst_33 : f32 to vector<32x128xf32>
    %45 = arith.maximumf %43, %44 : vector<32x128xf32>
    %c1_i32_34 = arith.constant 1 : i32
    %46 = tpu.dynamic_rotate %45 by %c1_i32_34 dim 1 : vector<32x128xf32>, i32 -> vector<32x128xf32>
    %c4_35 = arith.constant 4 : index
    %c0_36 = arith.constant 0 : index
    %47 = vector.load %arg1[%c4_35, %c0_36] : memref<10x128xf32, #tpu.memory_space<vmem>>, vector<1x128xf32>
    %48 = vector.broadcast %47 : vector<1x128xf32> to vector<32x128xf32>
    %49 = arith.mulf %46, %48 : vector<32x128xf32>
    %50 = arith.truncf %49 : vector<32x128xf32> to vector<32x128xbf16>
    %c0_37 = arith.constant 0 : index
    %c0_38 = arith.constant 0 : index
    %51 = vector.load %arg7[%c0_37, %c0_38] : memref<256x128xbf16, #tpu.memory_space<vmem>>, vector<32x128xbf16>
    tpu.vector_store %arg7[%c0_37, %c0_38], %50 {strides = array<i32>} : memref<256x128xbf16, #tpu.memory_space<vmem>>, vector<32x128xbf16>,
    %52 = arith.truncf %45 : vector<32x128xf32> to vector<32x128xbf16>
    %c32_39 = arith.constant 32 : index
    %c0_40 = arith.constant 0 : index
    %53 = vector.load %arg7[%c32_39, %c0_40] : memref<256x128xbf16, #tpu.memory_space<vmem>>, vector<32x128xbf16>
    tpu.vector_store %arg7[%c32_39, %c0_40], %52 {strides = array<i32>} : memref<256x128xbf16, #tpu.memory_space<vmem>>, vector<32x128xbf16>,
    %c127_i32_41 = arith.constant 127 : i32
    %54 = tpu.dynamic_rotate %45 by %c127_i32_41 dim 1 : vector<32x128xf32>, i32 -> vector<32x128xf32>
    %c5_42 = arith.constant 5 : index
    %c0_43 = arith.constant 0 : index
    %55 = vector.load %arg1[%c5_42, %c0_43] : memref<10x128xf32, #tpu.memory_space<vmem>>, vector<1x128xf32>
    %56 = vector.broadcast %55 : vector<1x128xf32> to vector<32x128xf32>
    %57 = arith.mulf %54, %56 : vector<32x128xf32>
    %58 = arith.truncf %57 : vector<32x128xf32> to vector<32x128xbf16>
    %c64_44 = arith.constant 64 : index
    %c0_45 = arith.constant 0 : index
    %59 = vector.load %arg7[%c64_44, %c0_45] : memref<256x128xbf16, #tpu.memory_space<vmem>>, vector<32x128xbf16>
    tpu.vector_store %arg7[%c64_44, %c0_45], %58 {strides = array<i32>} : memref<256x128xbf16, #tpu.memory_space<vmem>>, vector<32x128xbf16>,
    %c0_46 = arith.constant 0 : index
    %c256 = arith.constant 256 : index
    %60 = vector.load %arg5[%c0_46, %c256] : memref<32x1792xbf16, #tpu.memory_space<vmem>>, vector<32x128xbf16>
    %c0_47 = arith.constant 0 : index
    %c0_48 = arith.constant 0 : index
    %61 = vector.load %arg7[%c0_47, %c0_48] : memref<256x128xbf16, #tpu.memory_space<vmem>>, vector<128x128xbf16>
    %cst_49 = arith.constant dense<0.000000e+00> : vector<32x128xf32>
    %62 = tpu.matmul %60, %61, %cst_49 {dimension_numbers = #tpu.dot_dimension_numbers<[1], [0], [0], [1], [0, 0, 1, 1], [], []>} : vector<32x128xbf16>, vector<128x128xbf16>, vector<32x128xf32> -> vector<32x128xf32>
    %cst_50 = arith.constant 0.000000e+00 : f32
    %63 = vector.broadcast %cst_50 : f32 to vector<32x128xf32>
    %64 = arith.maximumf %62, %63 : vector<32x128xf32>
    %c1_i32_51 = arith.constant 1 : i32
    %65 = tpu.dynamic_rotate %64 by %c1_i32_51 dim 1 : vector<32x128xf32>, i32 -> vector<32x128xf32>
    %c4_52 = arith.constant 4 : index
    %c0_53 = arith.constant 0 : index
    %66 = vector.load %arg1[%c4_52, %c0_53] : memref<10x128xf32, #tpu.memory_space<vmem>>, vector<1x128xf32>
    %67 = vector.broadcast %66 : vector<1x128xf32> to vector<32x128xf32>
    %68 = arith.mulf %65, %67 : vector<32x128xf32>
    %69 = arith.truncf %68 : vector<32x128xf32> to vector<32x128xbf16>
    %c0_54 = arith.constant 0 : index
    %c0_55 = arith.constant 0 : index
    %70 = vector.load %arg7[%c0_54, %c0_55] : memref<256x128xbf16, #tpu.memory_space<vmem>>, vector<32x128xbf16>
    tpu.vector_store %arg7[%c0_54, %c0_55], %69 {strides = array<i32>} : memref<256x128xbf16, #tpu.memory_space<vmem>>, vector<32x128xbf16>,
    %71 = arith.truncf %64 : vector<32x128xf32> to vector<32x128xbf16>
    %c32_56 = arith.constant 32 : index
    %c0_57 = arith.constant 0 : index
    %72 = vector.load %arg7[%c32_56, %c0_57] : memref<256x128xbf16, #tpu.memory_space<vmem>>, vector<32x128xbf16>
    tpu.vector_store %arg7[%c32_56, %c0_57], %71 {strides = array<i32>} : memref<256x128xbf16, #tpu.memory_space<vmem>>, vector<32x128xbf16>,
    %c127_i32_58 = arith.constant 127 : i32
    %73 = tpu.dynamic_rotate %64 by %c127_i32_58 dim 1 : vector<32x128xf32>, i32 -> vector<32x128xf32>
    %c5_59 = arith.constant 5 : index
    %c0_60 = arith.constant 0 : index
    %74 = vector.load %arg1[%c5_59, %c0_60] : memref<10x128xf32, #tpu.memory_space<vmem>>, vector<1x128xf32>
    %75 = vector.broadcast %74 : vector<1x128xf32> to vector<32x128xf32>
    %76 = arith.mulf %73, %75 : vector<32x128xf32>
    %77 = arith.truncf %76 : vector<32x128xf32> to vector<32x128xbf16>
    %c64_61 = arith.constant 64 : index
    %c0_62 = arith.constant 0 : index
    %78 = vector.load %arg7[%c64_61, %c0_62] : memref<256x128xbf16, #tpu.memory_space<vmem>>, vector<32x128xbf16>
    tpu.vector_store %arg7[%c64_61, %c0_62], %77 {strides = array<i32>} : memref<256x128xbf16, #tpu.memory_space<vmem>>, vector<32x128xbf16>,
    %c0_63 = arith.constant 0 : index
    %c384 = arith.constant 384 : index
    %79 = vector.load %arg5[%c0_63, %c384] : memref<32x1792xbf16, #tpu.memory_space<vmem>>, vector<32x128xbf16>
    %c0_64 = arith.constant 0 : index
    %c0_65 = arith.constant 0 : index
    %80 = vector.load %arg7[%c0_64, %c0_65] : memref<256x128xbf16, #tpu.memory_space<vmem>>, vector<128x128xbf16>
    %cst_66 = arith.constant dense<0.000000e+00> : vector<32x128xf32>
    %81 = tpu.matmul %79, %80, %cst_66 {dimension_numbers = #tpu.dot_dimension_numbers<[1], [0], [0], [1], [0, 0, 1, 1], [], []>} : vector<32x128xbf16>, vector<128x128xbf16>, vector<32x128xf32> -> vector<32x128xf32>
    %cst_67 = arith.constant 0.000000e+00 : f32
    %82 = vector.broadcast %cst_67 : f32 to vector<32x128xf32>
    %83 = arith.maximumf %81, %82 : vector<32x128xf32>
    %84 = arith.truncf %83 : vector<32x128xf32> to vector<32x128xbf16>
    %c0_68 = arith.constant 0 : index
    %c0_69 = arith.constant 0 : index
    %85 = vector.load %arg7[%c0_68, %c0_69] : memref<256x128xbf16, #tpu.memory_space<vmem>>, vector<32x128xbf16>
    tpu.vector_store %arg7[%c0_68, %c0_69], %84 {strides = array<i32>} : memref<256x128xbf16, #tpu.memory_space<vmem>>, vector<32x128xbf16>,
    %c0_70 = arith.constant 0 : index
    %c512 = arith.constant 512 : index
    %86 = vector.load %arg5[%c0_70, %c512] : memref<32x1792xbf16, #tpu.memory_space<vmem>>, vector<32x128xbf16>
    %c0_71 = arith.constant 0 : index
    %c0_72 = arith.constant 0 : index
    %87 = vector.load %arg7[%c0_71, %c0_72] : memref<256x128xbf16, #tpu.memory_space<vmem>>, vector<128x128xbf16>
    %cst_73 = arith.constant dense<0.000000e+00> : vector<32x128xf32>
    %88 = tpu.matmul %86, %87, %cst_73 {dimension_numbers = #tpu.dot_dimension_numbers<[1], [0], [0], [1], [0, 0, 1, 1], [], []>} : vector<32x128xbf16>, vector<128x128xbf16>, vector<32x128xf32> -> vector<32x128xf32>
    %cst_74 = arith.constant 0.000000e+00 : f32
    %89 = vector.broadcast %cst_74 : f32 to vector<32x128xf32>
    %90 = arith.maximumf %88, %89 : vector<32x128xf32>
    %c6_i32 = arith.constant 6 : i32
    %91 = tpu.dynamic_rotate %83 by %c6_i32 dim 1 : vector<32x128xf32>, i32 -> vector<32x128xf32>
    %c3 = arith.constant 3 : index
    %c0_75 = arith.constant 0 : index
    %92 = vector.load %arg1[%c3, %c0_75] : memref<10x128xf32, #tpu.memory_space<vmem>>, vector<1x128xf32>
    %93 = vector.broadcast %92 : vector<1x128xf32> to vector<32x128xf32>
    %94 = arith.mulf %91, %93 : vector<32x128xf32>
    %95 = arith.truncf %94 : vector<32x128xf32> to vector<32x128xbf16>
    %c0_76 = arith.constant 0 : index
    %c0_77 = arith.constant 0 : index
    %96 = vector.load %arg7[%c0_76, %c0_77] : memref<256x128xbf16, #tpu.memory_space<vmem>>, vector<32x128xbf16>
    tpu.vector_store %arg7[%c0_76, %c0_77], %95 {strides = array<i32>} : memref<256x128xbf16, #tpu.memory_space<vmem>>, vector<32x128xbf16>,
    %97 = arith.truncf %83 : vector<32x128xf32> to vector<32x128xbf16>
    %c32_78 = arith.constant 32 : index
    %c0_79 = arith.constant 0 : index
    %98 = vector.load %arg7[%c32_78, %c0_79] : memref<256x128xbf16, #tpu.memory_space<vmem>>, vector<32x128xbf16>
    tpu.vector_store %arg7[%c32_78, %c0_79], %97 {strides = array<i32>} : memref<256x128xbf16, #tpu.memory_space<vmem>>, vector<32x128xbf16>,
    %c122_i32 = arith.constant 122 : i32
    %99 = tpu.dynamic_rotate %83 by %c122_i32 dim 1 : vector<32x128xf32>, i32 -> vector<32x128xf32>
    %c6 = arith.constant 6 : index
    %c0_80 = arith.constant 0 : index
    %100 = vector.load %arg1[%c6, %c0_80] : memref<10x128xf32, #tpu.memory_space<vmem>>, vector<1x128xf32>
    %101 = vector.broadcast %100 : vector<1x128xf32> to vector<32x128xf32>
    %102 = arith.mulf %99, %101 : vector<32x128xf32>
    %103 = arith.truncf %102 : vector<32x128xf32> to vector<32x128xbf16>
    %c64_81 = arith.constant 64 : index
    %c0_82 = arith.constant 0 : index
    %104 = vector.load %arg7[%c64_81, %c0_82] : memref<256x128xbf16, #tpu.memory_space<vmem>>, vector<32x128xbf16>
    tpu.vector_store %arg7[%c64_81, %c0_82], %103 {strides = array<i32>} : memref<256x128xbf16, #tpu.memory_space<vmem>>, vector<32x128xbf16>,
    %c0_83 = arith.constant 0 : index
    %c640 = arith.constant 640 : index
    %105 = vector.load %arg5[%c0_83, %c640] : memref<32x1792xbf16, #tpu.memory_space<vmem>>, vector<32x128xbf16>
    %c0_84 = arith.constant 0 : index
    %c0_85 = arith.constant 0 : index
    %106 = vector.load %arg7[%c0_84, %c0_85] : memref<256x128xbf16, #tpu.memory_space<vmem>>, vector<128x128xbf16>
    %cst_86 = arith.constant dense<0.000000e+00> : vector<32x128xf32>
    %107 = tpu.matmul %105, %106, %cst_86 {dimension_numbers = #tpu.dot_dimension_numbers<[1], [0], [0], [1], [0, 0, 1, 1], [], []>} : vector<32x128xbf16>, vector<128x128xbf16>, vector<32x128xf32> -> vector<32x128xf32>
    %cst_87 = arith.constant 0.000000e+00 : f32
    %108 = vector.broadcast %cst_87 : f32 to vector<32x128xf32>
    %109 = arith.maximumf %107, %108 : vector<32x128xf32>
    %c12_i32 = arith.constant 12 : i32
    %110 = tpu.dynamic_rotate %83 by %c12_i32 dim 1 : vector<32x128xf32>, i32 -> vector<32x128xf32>
    %c2 = arith.constant 2 : index
    %c0_88 = arith.constant 0 : index
    %111 = vector.load %arg1[%c2, %c0_88] : memref<10x128xf32, #tpu.memory_space<vmem>>, vector<1x128xf32>
    %112 = vector.broadcast %111 : vector<1x128xf32> to vector<32x128xf32>
    %113 = arith.mulf %110, %112 : vector<32x128xf32>
    %114 = arith.truncf %113 : vector<32x128xf32> to vector<32x128xbf16>
    %c0_89 = arith.constant 0 : index
    %c0_90 = arith.constant 0 : index
    %115 = vector.load %arg7[%c0_89, %c0_90] : memref<256x128xbf16, #tpu.memory_space<vmem>>, vector<32x128xbf16>
    tpu.vector_store %arg7[%c0_89, %c0_90], %114 {strides = array<i32>} : memref<256x128xbf16, #tpu.memory_space<vmem>>, vector<32x128xbf16>,
    %116 = arith.truncf %83 : vector<32x128xf32> to vector<32x128xbf16>
    %c32_91 = arith.constant 32 : index
    %c0_92 = arith.constant 0 : index
    %117 = vector.load %arg7[%c32_91, %c0_92] : memref<256x128xbf16, #tpu.memory_space<vmem>>, vector<32x128xbf16>
    tpu.vector_store %arg7[%c32_91, %c0_92], %116 {strides = array<i32>} : memref<256x128xbf16, #tpu.memory_space<vmem>>, vector<32x128xbf16>,
    %c116_i32 = arith.constant 116 : i32
    %118 = tpu.dynamic_rotate %83 by %c116_i32 dim 1 : vector<32x128xf32>, i32 -> vector<32x128xf32>
    %c7 = arith.constant 7 : index
    %c0_93 = arith.constant 0 : index
    %119 = vector.load %arg1[%c7, %c0_93] : memref<10x128xf32, #tpu.memory_space<vmem>>, vector<1x128xf32>
    %120 = vector.broadcast %119 : vector<1x128xf32> to vector<32x128xf32>
    %121 = arith.mulf %118, %120 : vector<32x128xf32>
    %122 = arith.truncf %121 : vector<32x128xf32> to vector<32x128xbf16>
    %c64_94 = arith.constant 64 : index
    %c0_95 = arith.constant 0 : index
    %123 = vector.load %arg7[%c64_94, %c0_95] : memref<256x128xbf16, #tpu.memory_space<vmem>>, vector<32x128xbf16>
    tpu.vector_store %arg7[%c64_94, %c0_95], %122 {strides = array<i32>} : memref<256x128xbf16, #tpu.memory_space<vmem>>, vector<32x128xbf16>,
    %c0_96 = arith.constant 0 : index
    %c768 = arith.constant 768 : index
    %124 = vector.load %arg5[%c0_96, %c768] : memref<32x1792xbf16, #tpu.memory_space<vmem>>, vector<32x128xbf16>
    %c0_97 = arith.constant 0 : index
    %c0_98 = arith.constant 0 : index
    %125 = vector.load %arg7[%c0_97, %c0_98] : memref<256x128xbf16, #tpu.memory_space<vmem>>, vector<128x128xbf16>
    %cst_99 = arith.constant dense<0.000000e+00> : vector<32x128xf32>
    %126 = tpu.matmul %124, %125, %cst_99 {dimension_numbers = #tpu.dot_dimension_numbers<[1], [0], [0], [1], [0, 0, 1, 1], [], []>} : vector<32x128xbf16>, vector<128x128xbf16>, vector<32x128xf32> -> vector<32x128xf32>
    %cst_100 = arith.constant 0.000000e+00 : f32
    %127 = vector.broadcast %cst_100 : f32 to vector<32x128xf32>
    %128 = arith.maximumf %126, %127 : vector<32x128xf32>
    %c18_i32 = arith.constant 18 : i32
    %129 = tpu.dynamic_rotate %83 by %c18_i32 dim 1 : vector<32x128xf32>, i32 -> vector<32x128xf32>
    %c1 = arith.constant 1 : index
    %c0_101 = arith.constant 0 : index
    %130 = vector.load %arg1[%c1, %c0_101] : memref<10x128xf32, #tpu.memory_space<vmem>>, vector<1x128xf32>
    %131 = vector.broadcast %130 : vector<1x128xf32> to vector<32x128xf32>
    %132 = arith.mulf %129, %131 : vector<32x128xf32>
    %133 = arith.truncf %132 : vector<32x128xf32> to vector<32x128xbf16>
    %c0_102 = arith.constant 0 : index
    %c0_103 = arith.constant 0 : index
    %134 = vector.load %arg7[%c0_102, %c0_103] : memref<256x128xbf16, #tpu.memory_space<vmem>>, vector<32x128xbf16>
    tpu.vector_store %arg7[%c0_102, %c0_103], %133 {strides = array<i32>} : memref<256x128xbf16, #tpu.memory_space<vmem>>, vector<32x128xbf16>,
    %135 = arith.truncf %83 : vector<32x128xf32> to vector<32x128xbf16>
    %c32_104 = arith.constant 32 : index
    %c0_105 = arith.constant 0 : index
    %136 = vector.load %arg7[%c32_104, %c0_105] : memref<256x128xbf16, #tpu.memory_space<vmem>>, vector<32x128xbf16>
    tpu.vector_store %arg7[%c32_104, %c0_105], %135 {strides = array<i32>} : memref<256x128xbf16, #tpu.memory_space<vmem>>, vector<32x128xbf16>,
    %c110_i32 = arith.constant 110 : i32
    %137 = tpu.dynamic_rotate %83 by %c110_i32 dim 1 : vector<32x128xf32>, i32 -> vector<32x128xf32>
    %c8_106 = arith.constant 8 : index
    %c0_107 = arith.constant 0 : index
    %138 = vector.load %arg1[%c8_106, %c0_107] : memref<10x128xf32, #tpu.memory_space<vmem>>, vector<1x128xf32>
    %139 = vector.broadcast %138 : vector<1x128xf32> to vector<32x128xf32>
    %140 = arith.mulf %137, %139 : vector<32x128xf32>
    %141 = arith.truncf %140 : vector<32x128xf32> to vector<32x128xbf16>
    %c64_108 = arith.constant 64 : index
    %c0_109 = arith.constant 0 : index
    %142 = vector.load %arg7[%c64_108, %c0_109] : memref<256x128xbf16, #tpu.memory_space<vmem>>, vector<32x128xbf16>
    tpu.vector_store %arg7[%c64_108, %c0_109], %141 {strides = array<i32>} : memref<256x128xbf16, #tpu.memory_space<vmem>>, vector<32x128xbf16>,
    %c0_110 = arith.constant 0 : index
    %c896 = arith.constant 896 : index
    %143 = vector.load %arg5[%c0_110, %c896] : memref<32x1792xbf16, #tpu.memory_space<vmem>>, vector<32x128xbf16>
    %c0_111 = arith.constant 0 : index
    %c0_112 = arith.constant 0 : index
    %144 = vector.load %arg7[%c0_111, %c0_112] : memref<256x128xbf16, #tpu.memory_space<vmem>>, vector<128x128xbf16>
    %cst_113 = arith.constant dense<0.000000e+00> : vector<32x128xf32>
    %145 = tpu.matmul %143, %144, %cst_113 {dimension_numbers = #tpu.dot_dimension_numbers<[1], [0], [0], [1], [0, 0, 1, 1], [], []>} : vector<32x128xbf16>, vector<128x128xbf16>, vector<32x128xf32> -> vector<32x128xf32>
    %cst_114 = arith.constant 0.000000e+00 : f32
    %146 = vector.broadcast %cst_114 : f32 to vector<32x128xf32>
    %147 = arith.maximumf %145, %146 : vector<32x128xf32>
    %c24_i32 = arith.constant 24 : i32
    %148 = tpu.dynamic_rotate %83 by %c24_i32 dim 1 : vector<32x128xf32>, i32 -> vector<32x128xf32>
    %c0_115 = arith.constant 0 : index
    %c0_116 = arith.constant 0 : index
    %149 = vector.load %arg1[%c0_115, %c0_116] : memref<10x128xf32, #tpu.memory_space<vmem>>, vector<1x128xf32>
    %150 = vector.broadcast %149 : vector<1x128xf32> to vector<32x128xf32>
    %151 = arith.mulf %148, %150 : vector<32x128xf32>
    %152 = arith.truncf %151 : vector<32x128xf32> to vector<32x128xbf16>
    %c0_117 = arith.constant 0 : index
    %c0_118 = arith.constant 0 : index
    %153 = vector.load %arg7[%c0_117, %c0_118] : memref<256x128xbf16, #tpu.memory_space<vmem>>, vector<32x128xbf16>
    tpu.vector_store %arg7[%c0_117, %c0_118], %152 {strides = array<i32>} : memref<256x128xbf16, #tpu.memory_space<vmem>>, vector<32x128xbf16>,
    %154 = arith.truncf %83 : vector<32x128xf32> to vector<32x128xbf16>
    %c32_119 = arith.constant 32 : index
    %c0_120 = arith.constant 0 : index
    %155 = vector.load %arg7[%c32_119, %c0_120] : memref<256x128xbf16, #tpu.memory_space<vmem>>, vector<32x128xbf16>
    tpu.vector_store %arg7[%c32_119, %c0_120], %154 {strides = array<i32>} : memref<256x128xbf16, #tpu.memory_space<vmem>>, vector<32x128xbf16>,
    %c104_i32 = arith.constant 104 : i32
    %156 = tpu.dynamic_rotate %83 by %c104_i32 dim 1 : vector<32x128xf32>, i32 -> vector<32x128xf32>
    %c9 = arith.constant 9 : index
    %c0_121 = arith.constant 0 : index
    %157 = vector.load %arg1[%c9, %c0_121] : memref<10x128xf32, #tpu.memory_space<vmem>>, vector<1x128xf32>
    %158 = vector.broadcast %157 : vector<1x128xf32> to vector<32x128xf32>
    %159 = arith.mulf %156, %158 : vector<32x128xf32>
    %160 = arith.truncf %159 : vector<32x128xf32> to vector<32x128xbf16>
    %c64_122 = arith.constant 64 : index
    %c0_123 = arith.constant 0 : index
    %161 = vector.load %arg7[%c64_122, %c0_123] : memref<256x128xbf16, #tpu.memory_space<vmem>>, vector<32x128xbf16>
    tpu.vector_store %arg7[%c64_122, %c0_123], %160 {strides = array<i32>} : memref<256x128xbf16, #tpu.memory_space<vmem>>, vector<32x128xbf16>,
    %c0_124 = arith.constant 0 : index
    %c1024 = arith.constant 1024 : index
    %162 = vector.load %arg5[%c0_124, %c1024] : memref<32x1792xbf16, #tpu.memory_space<vmem>>, vector<32x128xbf16>
    %c0_125 = arith.constant 0 : index
    %c0_126 = arith.constant 0 : index
    %163 = vector.load %arg7[%c0_125, %c0_126] : memref<256x128xbf16, #tpu.memory_space<vmem>>, vector<128x128xbf16>
    %cst_127 = arith.constant dense<0.000000e+00> : vector<32x128xf32>
    %164 = tpu.matmul %162, %163, %cst_127 {dimension_numbers = #tpu.dot_dimension_numbers<[1], [0], [0], [1], [0, 0, 1, 1], [], []>} : vector<32x128xbf16>, vector<128x128xbf16>, vector<32x128xf32> -> vector<32x128xf32>
    %cst_128 = arith.constant 0.000000e+00 : f32
    %165 = vector.broadcast %cst_128 : f32 to vector<32x128xf32>
    %166 = arith.maximumf %164, %165 : vector<32x128xf32>
    %c0_129 = arith.constant 0 : index
    %c0_130 = arith.constant 0 : index
    %167 = vector.load %arg2[%c0_129, %c0_130] : memref<8x128xbf16, #tpu.memory_space<vmem>>, vector<8x128xbf16>
    %168 = arith.truncf %83 : vector<32x128xf32> to vector<32x128xbf16>
    %c0_131 = arith.constant 0 : index
    %c0_132 = arith.constant 0 : index
    %169 = vector.load %arg3[%c0_131, %c0_132] : memref<128x8xbf16, #tpu.memory_space<vmem>>, vector<128x8xbf16>
    %cst_133 = arith.constant dense<0.000000e+00> : vector<32x8xf32>
    %170 = tpu.matmul %168, %169, %cst_133 {dimension_numbers = #tpu.dot_dimension_numbers<[1], [0], [0], [1], [0, 0, 1, 1], [], []>} : vector<32x128xbf16>, vector<128x8xbf16>, vector<32x8xf32> -> vector<32x8xf32>
    %cst_134 = arith.constant 7.812500e-03 : f32
    %171 = vector.broadcast %cst_134 : f32 to vector<32x8xf32>
    %172 = arith.mulf %170, %171 : vector<32x8xf32>
    %c0_135 = arith.constant 0 : index
    %c1152 = arith.constant 1152 : index
    %173 = vector.load %arg5[%c0_135, %c1152] : memref<32x1792xbf16, #tpu.memory_space<vmem>>, vector<32x32xbf16>
    %c0_136 = arith.constant 0 : index
    %c1279 = arith.constant 1279 : index
    %174 = vector.load %arg5[%c0_136, %c1279] : memref<32x1792xbf16, #tpu.memory_space<vmem>>, vector<32x1xbf16>
    %175 = arith.extf %174 : vector<32x1xbf16> to vector<32x1xf32>
    %176 = arith.truncf %172 : vector<32x8xf32> to vector<32x8xbf16>
    %cst_137 = arith.constant dense<0.000000e+00> : vector<32x8xf32>
    %177 = tpu.matmul %173, %176, %cst_137 {dimension_numbers = #tpu.dot_dimension_numbers<[1], [0], [0], [1], [0, 0, 1, 1], [], []>} : vector<32x32xbf16>, vector<32x8xbf16>, vector<32x8xf32> -> vector<32x8xf32>
    %178 = vector.broadcast %175 : vector<32x1xf32> to vector<32x8xf32>
    %179 = arith.addf %177, %178 : vector<32x8xf32>
    %cst_138 = arith.constant 0.000000e+00 : f32
    %180 = vector.broadcast %cst_138 : f32 to vector<32x8xf32>
    %181 = arith.maximumf %179, %180 : vector<32x8xf32>
    %182 = arith.truncf %181 : vector<32x8xf32> to vector<32x8xbf16>
    %cst_139 = arith.constant dense<0.000000e+00> : vector<32x128xf32>
    %183 = tpu.matmul %182, %167, %cst_139 {dimension_numbers = #tpu.dot_dimension_numbers<[1], [0], [0], [1], [0, 0, 1, 1], [], []>} : vector<32x8xbf16>, vector<8x128xbf16>, vector<32x128xf32> -> vector<32x128xf32>
    %184 = arith.truncf %90 : vector<32x128xf32> to vector<32x128xbf16>
    %c0_140 = arith.constant 0 : index
    %c0_141 = arith.constant 0 : index
    %185 = vector.load %arg7[%c0_140, %c0_141] : memref<256x128xbf16, #tpu.memory_space<vmem>>, vector<32x128xbf16>
    tpu.vector_store %arg7[%c0_140, %c0_141], %184 {strides = array<i32>} : memref<256x128xbf16, #tpu.memory_space<vmem>>, vector<32x128xbf16>,
    %186 = arith.truncf %109 : vector<32x128xf32> to vector<32x128xbf16>
    %c32_142 = arith.constant 32 : index
    %c0_143 = arith.constant 0 : index
    %187 = vector.load %arg7[%c32_142, %c0_143] : memref<256x128xbf16, #tpu.memory_space<vmem>>, vector<32x128xbf16>
    tpu.vector_store %arg7[%c32_142, %c0_143], %186 {strides = array<i32>} : memref<256x128xbf16, #tpu.memory_space<vmem>>, vector<32x128xbf16>,
    %188 = arith.truncf %128 : vector<32x128xf32> to vector<32x128xbf16>
    %c64_144 = arith.constant 64 : index
    %c0_145 = arith.constant 0 : index
    %189 = vector.load %arg7[%c64_144, %c0_145] : memref<256x128xbf16, #tpu.memory_space<vmem>>, vector<32x128xbf16>
    tpu.vector_store %arg7[%c64_144, %c0_145], %188 {strides = array<i32>} : memref<256x128xbf16, #tpu.memory_space<vmem>>, vector<32x128xbf16>,
    %190 = arith.truncf %147 : vector<32x128xf32> to vector<32x128xbf16>
    %c96 = arith.constant 96 : index
    %c0_146 = arith.constant 0 : index
    %191 = vector.load %arg7[%c96, %c0_146] : memref<256x128xbf16, #tpu.memory_space<vmem>>, vector<32x128xbf16>
    tpu.vector_store %arg7[%c96, %c0_146], %190 {strides = array<i32>} : memref<256x128xbf16, #tpu.memory_space<vmem>>, vector<32x128xbf16>,
    %192 = arith.truncf %166 : vector<32x128xf32> to vector<32x128xbf16>
    %c128_147 = arith.constant 128 : index
    %c0_148 = arith.constant 0 : index
    %193 = vector.load %arg7[%c128_147, %c0_148] : memref<256x128xbf16, #tpu.memory_space<vmem>>, vector<32x128xbf16>
    tpu.vector_store %arg7[%c128_147, %c0_148], %192 {strides = array<i32>} : memref<256x128xbf16, #tpu.memory_space<vmem>>, vector<32x128xbf16>,
    %194 = arith.truncf %183 : vector<32x128xf32> to vector<32x128xbf16>
    %c160 = arith.constant 160 : index
    %c0_149 = arith.constant 0 : index
    %195 = vector.load %arg7[%c160, %c0_149] : memref<256x128xbf16, #tpu.memory_space<vmem>>, vector<32x128xbf16>
    tpu.vector_store %arg7[%c160, %c0_149], %194 {strides = array<i32>} : memref<256x128xbf16, #tpu.memory_space<vmem>>, vector<32x128xbf16>,
    %c0_150 = arith.constant 0 : index
    %c1280 = arith.constant 1280 : index
    %196 = vector.load %arg5[%c0_150, %c1280] : memref<32x1792xbf16, #tpu.memory_space<vmem>>, vector<32x256xbf16>
    %c0_151 = arith.constant 0 : index
    %c0_152 = arith.constant 0 : index
    %197 = vector.load %arg7[%c0_151, %c0_152] : memref<256x128xbf16, #tpu.memory_space<vmem>>, vector<256x128xbf16>
    %cst_153 = arith.constant dense<0.000000e+00> : vector<32x128xf32>
    %198 = tpu.matmul %196, %197, %cst_153 {dimension_numbers = #tpu.dot_dimension_numbers<[1], [0], [0], [1], [0, 0, 1, 1], [], []>} : vector<32x256xbf16>, vector<256x128xbf16>, vector<32x128xf32> -> vector<32x128xf32>
    %cst_154 = arith.constant 0.000000e+00 : f32
    %199 = vector.broadcast %cst_154 : f32 to vector<32x128xf32>
    %200 = arith.maximumf %198, %199 : vector<32x128xf32>
    %cst_155 = arith.constant 1.000000e+00 : bf16
    %201 = vector.broadcast %cst_155 : bf16 to vector<1x128xbf16>
    %c127_156 = arith.constant 127 : index
    %c0_157 = arith.constant 0 : index
    %202 = vector.load %arg7[%c127_156, %c0_157] : memref<256x128xbf16, #tpu.memory_space<vmem>>, vector<1x128xbf16>
    tpu.vector_store %arg7[%c127_156, %c0_157], %201 {strides = array<i32>} : memref<256x128xbf16, #tpu.memory_space<vmem>>, vector<1x128xbf16>,
    %c1_i32_158 = arith.constant 1 : i32
    %203 = tpu.dynamic_rotate %200 by %c1_i32_158 dim 1 : vector<32x128xf32>, i32 -> vector<32x128xf32>
    %c4_159 = arith.constant 4 : index
    %c0_160 = arith.constant 0 : index
    %204 = vector.load %arg1[%c4_159, %c0_160] : memref<10x128xf32, #tpu.memory_space<vmem>>, vector<1x128xf32>
    %205 = vector.broadcast %204 : vector<1x128xf32> to vector<32x128xf32>
    %206 = arith.mulf %203, %205 : vector<32x128xf32>
    %207 = arith.truncf %206 : vector<32x128xf32> to vector<32x128xbf16>
    %c0_161 = arith.constant 0 : index
    %c0_162 = arith.constant 0 : index
    %208 = vector.load %arg7[%c0_161, %c0_162] : memref<256x128xbf16, #tpu.memory_space<vmem>>, vector<32x128xbf16>
    tpu.vector_store %arg7[%c0_161, %c0_162], %207 {strides = array<i32>} : memref<256x128xbf16, #tpu.memory_space<vmem>>, vector<32x128xbf16>,
    %209 = arith.truncf %200 : vector<32x128xf32> to vector<32x128xbf16>
    %c32_163 = arith.constant 32 : index
    %c0_164 = arith.constant 0 : index
    %210 = vector.load %arg7[%c32_163, %c0_164] : memref<256x128xbf16, #tpu.memory_space<vmem>>, vector<32x128xbf16>
    tpu.vector_store %arg7[%c32_163, %c0_164], %209 {strides = array<i32>} : memref<256x128xbf16, #tpu.memory_space<vmem>>, vector<32x128xbf16>,
    %c127_i32_165 = arith.constant 127 : i32
    %211 = tpu.dynamic_rotate %200 by %c127_i32_165 dim 1 : vector<32x128xf32>, i32 -> vector<32x128xf32>
    %c5_166 = arith.constant 5 : index
    %c0_167 = arith.constant 0 : index
    %212 = vector.load %arg1[%c5_166, %c0_167] : memref<10x128xf32, #tpu.memory_space<vmem>>, vector<1x128xf32>
    %213 = vector.broadcast %212 : vector<1x128xf32> to vector<32x128xf32>
    %214 = arith.mulf %211, %213 : vector<32x128xf32>
    %215 = arith.truncf %214 : vector<32x128xf32> to vector<32x128xbf16>
    %c64_168 = arith.constant 64 : index
    %c0_169 = arith.constant 0 : index
    %216 = vector.load %arg7[%c64_168, %c0_169] : memref<256x128xbf16, #tpu.memory_space<vmem>>, vector<32x128xbf16>
    tpu.vector_store %arg7[%c64_168, %c0_169], %215 {strides = array<i32>} : memref<256x128xbf16, #tpu.memory_space<vmem>>, vector<32x128xbf16>,
    %c0_170 = arith.constant 0 : index
    %c1536 = arith.constant 1536 : index
    %217 = vector.load %arg5[%c0_170, %c1536] : memref<32x1792xbf16, #tpu.memory_space<vmem>>, vector<16x128xbf16>
    %c0_171 = arith.constant 0 : index
    %c0_172 = arith.constant 0 : index
    %218 = vector.load %arg7[%c0_171, %c0_172] : memref<256x128xbf16, #tpu.memory_space<vmem>>, vector<128x128xbf16>
    %cst_173 = arith.constant dense<0.000000e+00> : vector<16x128xf32>
    %219 = tpu.matmul %217, %218, %cst_173 {dimension_numbers = #tpu.dot_dimension_numbers<[1], [0], [0], [1], [0, 0, 1, 1], [], []>} : vector<16x128xbf16>, vector<128x128xbf16>, vector<16x128xf32> -> vector<16x128xf32>
    %cst_174 = arith.constant 0.000000e+00 : f32
    %220 = vector.broadcast %cst_174 : f32 to vector<16x128xf32>
    %221 = arith.maximumf %219, %220 : vector<16x128xf32>
    %222 = arith.truncf %221 : vector<16x128xf32> to vector<16x128xbf16>
    %c0_175 = arith.constant 0 : index
    %c0_176 = arith.constant 0 : index
    %223 = vector.load %arg7[%c0_175, %c0_176] : memref<256x128xbf16, #tpu.memory_space<vmem>>, vector<16x128xbf16>
    tpu.vector_store %arg7[%c0_175, %c0_176], %222 {strides = array<i32>} : memref<256x128xbf16, #tpu.memory_space<vmem>>, vector<16x128xbf16>,
    %c0_177 = arith.constant 0 : index
    %c1664 = arith.constant 1664 : index
    %224 = vector.load %arg5[%c0_177, %c1664] : memref<32x1792xbf16, #tpu.memory_space<vmem>>, vector<8x128xbf16>
    %c0_178 = arith.constant 0 : index
    %c0_179 = arith.constant 0 : index
    %225 = vector.load %arg7[%c0_178, %c0_179] : memref<256x128xbf16, #tpu.memory_space<vmem>>, vector<128x128xbf16>
    %cst_180 = arith.constant dense<0.000000e+00> : vector<8x128xf32>
    %226 = tpu.matmul %224, %225, %cst_180 {dimension_numbers = #tpu.dot_dimension_numbers<[1], [0], [0], [1], [0, 0, 1, 1], [], []>} : vector<8x128xbf16>, vector<128x128xbf16>, vector<8x128xf32> -> vector<8x128xf32>
    %cst_181 = arith.constant 0.000000e+00 : f32
    %227 = vector.broadcast %cst_181 : f32 to vector<8x128xf32>
    %228 = arith.maximumf %226, %227 : vector<8x128xf32>
    %229 = vector.extract_strided_slice %228 {offsets = [0, 0], sizes = [1, 128], strides = [1, 1]} : vector<8x128xf32> to vector<1x128xf32>
    %230 = arith.negf %229 : vector<1x128xf32>
    %231 = math.exp %230 : vector<1x128xf32>
    %cst_182 = arith.constant 1.000000e+00 : f32
    %232 = vector.broadcast %cst_182 : f32 to vector<1x128xf32>
    %233 = arith.addf %232, %231 : vector<1x128xf32>
    %234 = arith.divf %232, %233 : vector<1x128xf32>
    %c0_183 = arith.constant 0 : index
    %c0_184 = arith.constant 0 : index
    %235 = vector.load %arg6[%c0_183, %c0_184] : memref<1x128xf32, #tpu.memory_space<vmem>>, vector<1x128xf32>
    tpu.vector_store %arg6[%c0_183, %c0_184], %234 {strides = array<i32>} : memref<1x128xf32, #tpu.memory_space<vmem>>, vector<1x128xf32>,
    return
  }
  func.func @transform_0(%arg0: i32) -> (i32, i32) {
    %c0_i32 = arith.constant 0 : i32
    %c0_i32_0 = arith.constant 0 : i32
    %c0_i32_1 = arith.constant 0 : i32
    return %c0_i32, %c0_i32_0 : i32, i32
  }
  func.func @transform_1(%arg0: i32) -> (i32, i32) {
    %c0_i32 = arith.constant 0 : i32
    %c0_i32_0 = arith.constant 0 : i32
    %c0_i32_1 = arith.constant 0 : i32
    return %c0_i32, %c0_i32_0 : i32, i32
  }
  func.func @transform_2(%arg0: i32) -> (i32, i32) {
    %c0_i32 = arith.constant 0 : i32
    %c0_i32_0 = arith.constant 0 : i32
    %c0_i32_1 = arith.constant 0 : i32
    return %c0_i32, %c0_i32_0 : i32, i32
  }
  func.func @transform_3(%arg0: i32) -> (i32, i32) {
    %c0_i32 = arith.constant 0 : i32
    %c0_i32_0 = arith.constant 0 : i32
    return %c0_i32, %arg0 : i32, i32
  }
  func.func @transform_4(%arg0: i32) -> (i32, i32) {
    %c0_i32 = arith.constant 0 : i32
    %c0_i32_0 = arith.constant 0 : i32
    %c0_i32_1 = arith.constant 0 : i32
    return %c0_i32, %c0_i32_0 : i32, i32
  }
  func.func @transform_5(%arg0: i32) -> (i32, i32) {
    %c0_i32 = arith.constant 0 : i32
    %c0_i32_0 = arith.constant 0 : i32
    return %c0_i32, %arg0 : i32, i32
  }
}

</mosaic_0001>

<llo_original>
// kernel: tpu_custom_call.1
$region0: #{tpu_custom_call.1}
  #allocation0 [shape = 'u32[]', space=smem, size = 0x4, offset = 0x4, fixed_abs, tag = 'smem constant byte address 0x4 - core index']
  #allocation1 [shape = 'u32[144,128]{1,0:T(1,128)}', space=vmem, size = 0x12000, scoped, tag = 'internal scratch']
  #allocation2 [shape = 'bf16[256,128]{1,0:T(16,128)(2,1)}', space=vmem, size = 0x10000, scoped, tag = 'scratch operand']
  %s0 = inlined_call_operand.vmem [shape: f32[10,128], index: 0, kind: input, shape index: {}]
  %s1 = inlined_call_operand.vmem [shape: bf16[8,128], index: 1, kind: input, shape index: {}]
  %s2 = inlined_call_operand.vmem [shape: bf16[128,8], index: 2, kind: input, shape index: {}]
  %s3 = inlined_call_operand.vmem [shape: bf16[8,256], index: 3, kind: input, shape index: {}]
  %s4 = inlined_call_operand.hbm [shape: bf16[32,1792], index: 4, kind: input, shape index: {}]
  %s5 = inlined_call_operand.hbm [shape: f32[1,256], index: 5, kind: output, shape index: {}]
  %s6 = sld [smem:[#allocation0]]
  $region57: #{tpu_custom_call.1} parent=0
    _
  %s8 = ssub.s32 1, %s6
  %s9 = scalar_select 0, %s8, %s6
  $region1: #{tpu_custom_call.1} parent=0
    #allocation3 [shape = 'u8[114688]{0}', space=vmem, size = 0x1c000, scoped, tag = 'input window, operand 4, single buffered']
    #allocation4 [shape = 's32[2]{0}', space=sflag, size = 0x8, scoped, tag = 'scoped memory for tpu_custom_call.1']
    #allocation5 [shape = 's32[2]{0}', space=sflag, size = 0x8, scoped, tag = 'scoped memory for tpu_custom_call.1']
    #allocation6 [shape = 'u8[1024]{0}', space=vmem, size = 0x400, scoped, tag = 'output window, operand 0']
    %10 = vsyncpa [#allocation4], 0
    %11 = vsyncpa [#allocation5], 0
    %s12 = scalar_lea.sflag [#allocation5], 1
    %13 = vsyncpa %s12, 0
    loop: start=0, step=1, limit=4
    $region2: #{tpu_custom_call.1} parent=1 // loop_pre_header
      _
    $region3: #{tpu_custom_call.1} parent=1 // loop_header
      %s15 = sphi 0, %s19
      %p16 = scmp.ge.s32.totalorder %s15, 4
      %s23 = sphi 0, %s23
      %s25 = sphi 0, %s23
      %s26 = sphi 0, %s25
      %s40 = sphi 0, %s26
      %s44 = sphi 0, %s44
      %s46 = sphi 0, %s44
      %s47 = sphi 0, %s46
      %s61 = sphi 0, %s47
      %s65 = sphi 0, %s65
      %s67 = sphi 0, %s65
      %s68 = sphi 0, %s67
      %s82 = sphi 0, %s68
      %s88 = sphi 0, %s90
      %s91 = sphi 0, %s88
      %s92 = sphi 0, %s91
      %s108 = sphi 0, %s92
      %s112 = sphi 0, %s112
      %s114 = sphi 0, %s112
      %s115 = sphi 0, %s114
      %s129 = sphi 0, %s115
      %s135 = sphi 0, %s137
      %s138 = sphi 0, %s135
      %s139 = sphi 0, %s138
      %s155 = sphi 0, %s139
    $region4: #{tpu_custom_call.1} parent=1 // loop_header_branch
      %18 = sbr.rel (%p16) target = $region8
    $region5: #{tpu_custom_call.1} parent=1 // loop_body
      %s20 = ssub.s32 %s15, 1
      %s21 = ssub.s32 %s15, 2
      %s22 = sadd.s32 %s15, 1
      %s24 = sadd.s32 %s23, 1
      %p27 = scmp.eq.s32.totalorder %s15, 1
      %p28 = scmp.ne.s32.totalorder %s23, %s25
      %p29 = scmp.eq.s32.totalorder %s15, 0
      %p30 = por %p28, %p29
      %p31 = scmp.ne.s32.totalorder %s23, %s25
      %p32 = scmp.eq.s32.totalorder %s20, 1
      %p33 = por %p31, %p32
      %p34 = scmp.ne.s32.totalorder %s25, %s26
      %p35 = scmp.eq.s32.totalorder %s20, 0
      %p36 = por %p34, %p35
      %p37 = scmp.ne.s32.totalorder %s25, %s26
      %p38 = scmp.eq.s32.totalorder %s21, 1
      %p39 = por %p37, %p38
      %p41 = scmp.ne.s32.totalorder %s26, %s40
      %p42 = scmp.eq.s32.totalorder %s21, 0
      %p43 = por %p41, %p42
      %s45 = sadd.s32 %s44, 1
      %p48 = scmp.eq.s32.totalorder %s15, 1
      %p49 = scmp.ne.s32.totalorder %s44, %s46
      %p50 = scmp.eq.s32.totalorder %s15, 0
      %p51 = por %p49, %p50
      %p52 = scmp.ne.s32.totalorder %s44, %s46
      %p53 = scmp.eq.s32.totalorder %s20, 1
      %p54 = por %p52, %p53
      %p55 = scmp.ne.s32.totalorder %s46, %s47
      %p56 = scmp.eq.s32.totalorder %s20, 0
      %p57 = por %p55, %p56
      %p58 = scmp.ne.s32.totalorder %s46, %s47
      %p59 = scmp.eq.s32.totalorder %s21, 1
      %p60 = por %p58, %p59
      %p62 = scmp.ne.s32.totalorder %s47, %s61
      %p63 = scmp.eq.s32.totalorder %s21, 0
      %p64 = por %p62, %p63
      %s66 = sadd.s32 %s65, 1
      %p69 = scmp.eq.s32.totalorder %s15, 1
      %p70 = scmp.ne.s32.totalorder %s65, %s67
      %p71 = scmp.eq.s32.totalorder %s15, 0
      %p72 = por %p70, %p71
      %p73 = scmp.ne.s32.totalorder %s65, %s67
      %p74 = scmp.eq.s32.totalorder %s20, 1
      %p75 = por %p73, %p74
      %p76 = scmp.ne.s32.totalorder %s67, %s68
      %p77 = scmp.eq.s32.totalorder %s20, 0
      %p78 = por %p76, %p77
      %p79 = scmp.ne.s32.totalorder %s67, %s68
      %p80 = scmp.eq.s32.totalorder %s21, 1
      %p81 = por %p79, %p80
      %p83 = scmp.ne.s32.totalorder %s68, %s82
      %p84 = scmp.eq.s32.totalorder %s21, 0
      %p85 = por %p83, %p84
      %s86 = ssub.s32 %s15, %s22
      %p87 = scmp.eq.s32.totalorder %s86, 0
      %s89 = sadd.s32 %s88, 1
      %s90 = scalar_select %p87, %s88, %s89
      %p93 = pneg %p87
      %p94 = scmp.eq.s32.totalorder %s15, 1
      %p95 = por %p93, %p94
      %p96 = scmp.ne.s32.totalorder %s88, %s91
      %p97 = scmp.eq.s32.totalorder %s15, 0
      %p98 = por %p96, %p97
      %p99 = scmp.ne.s32.totalorder %s88, %s91
      %p100 = scmp.eq.s32.totalorder %s20, 1
      %p101 = por %p99, %p100
      %p102 = scmp.ne.s32.totalorder %s91, %s92
      %p103 = scmp.eq.s32.totalorder %s20, 0
      %p104 = por %p102, %p103
      %p105 = scmp.ne.s32.totalorder %s91, %s92
      %p106 = scmp.eq.s32.totalorder %s21, 1
      %p107 = por %p105, %p106
      %p109 = scmp.ne.s32.totalorder %s92, %s108
      %p110 = scmp.eq.s32.totalorder %s21, 0
      %p111 = por %p109, %p110
      %s113 = sadd.s32 %s112, 1
      %p116 = scmp.eq.s32.totalorder %s15, 1
      %p117 = scmp.ne.s32.totalorder %s112, %s114
      %p118 = scmp.eq.s32.totalorder %s15, 0
      %p119 = por %p117, %p118
      %p120 = scmp.ne.s32.totalorder %s112, %s114
      %p121 = scmp.eq.s32.totalorder %s20, 1
      %p122 = por %p120, %p121
      %p123 = scmp.ne.s32.totalorder %s114, %s115
      %p124 = scmp.eq.s32.totalorder %s20, 0
      %p125 = por %p123, %p124
      %p126 = scmp.ne.s32.totalorder %s114, %s115
      %p127 = scmp.eq.s32.totalorder %s21, 1
      %p128 = por %p126, %p127
      %p130 = scmp.ne.s32.totalorder %s115, %s129
      %p131 = scmp.eq.s32.totalorder %s21, 0
      %p132 = por %p130, %p131
      %s133 = ssub.s32 %s15, %s22
      %p134 = scmp.eq.s32.totalorder %s133, 0
      %s136 = sadd.s32 %s135, 1
      %s137 = scalar_select %p134, %s135, %s136
      %p140 = pneg %p134
      %p141 = scmp.eq.s32.totalorder %s15, 1
      %p142 = por %p140, %p141
      %p143 = scmp.ne.s32.totalorder %s135, %s138
      %p144 = scmp.eq.s32.totalorder %s15, 0
      %p145 = por %p143, %p144
      %p146 = scmp.ne.s32.totalorder %s135, %s138
      %p147 = scmp.eq.s32.totalorder %s20, 1
      %p148 = por %p146, %p147
      %p149 = scmp.ne.s32.totalorder %s138, %s139
      %p150 = scmp.eq.s32.totalorder %s20, 0
      %p151 = por %p149, %p150
      %p152 = scmp.ne.s32.totalorder %s138, %s139
      %p153 = scmp.eq.s32.totalorder %s21, 1
      %p154 = por %p152, %p153
      %p156 = scmp.ne.s32.totalorder %s139, %s155
      %p157 = scmp.eq.s32.totalorder %s21, 0
      %p158 = por %p156, %p157
      %p159 = scmp.le.s32.totalorder 1, %s15
      %p160 = scmp.lt.s32.totalorder %s15, 3
      %p161 = pnand %p159, %p160
      %p162 = pneg %p161
      // Predicated region
      $region9: #{tpu_custom_call.1} parent=5 // pred_check
        _
      $region10: #{tpu_custom_call.1} parent=5 // pred_check_branch
        %164 = sbr.rel (%p161) target = $region12
      $region11: #{tpu_custom_call.1} parent=5 // pred_region
        %s165 = ssub.s32 %s15, 1
        // Predicated region
        $region13: #{tpu_custom_call.1} parent=11 // pred_check
          %p166 = pneg %p36
        $region14: #{tpu_custom_call.1} parent=11 // pred_check_branch
          %168 = sbr.rel (%p166) target = $region16
        $region15: #{tpu_custom_call.1} parent=11 // pred_region
          _
        $region16: #{tpu_custom_call.1} parent=11 // pred_fallthru
          _
        // Predicated region
        $region17: #{tpu_custom_call.1} parent=11 // pred_check
          %p169 = pneg %p57
        $region18: #{tpu_custom_call.1} parent=11 // pred_check_branch
          %171 = sbr.rel (%p169) target = $region20
        $region19: #{tpu_custom_call.1} parent=11 // pred_region
          _
        $region20: #{tpu_custom_call.1} parent=11 // pred_fallthru
          _
        // Predicated region
        $region21: #{tpu_custom_call.1} parent=11 // pred_check
          %p172 = pneg %p78
        $region22: #{tpu_custom_call.1} parent=11 // pred_check_branch
          %174 = sbr.rel (%p172) target = $region24
        $region23: #{tpu_custom_call.1} parent=11 // pred_region
          _
        $region24: #{tpu_custom_call.1} parent=11 // pred_fallthru
          _
        // Predicated region
        $region25: #{tpu_custom_call.1} parent=11 // pred_check
          %p175 = pneg %p125
        $region26: #{tpu_custom_call.1} parent=11 // pred_check_branch
          %177 = sbr.rel (%p175) target = $region28
        $region27: #{tpu_custom_call.1} parent=11 // pred_region
          %s179 = ssub.s32 3584, 3584
          %180 = vsyncadd [#allocation4], %s179
          %s181 = sshll.u32 [#allocation3], 4
          %s182 = int_to_ptr.vmem [resolvable:$true] %s181
          %187 = dma.hbm_to_vmem [thread:$0]  %s4, 3584, %s182, [#allocation4], 896, 896, 56
        $region28: #{tpu_custom_call.1} parent=11 // pred_fallthru
          _
      $region12: #{tpu_custom_call.1} parent=5 // pred_fallthru
        _
      %p188 = scmp.lt.s32.totalorder %s15, 2
      // Predicated region
      $region29: #{tpu_custom_call.1} parent=5 // pred_check
        %p189 = pneg %p188
      $region30: #{tpu_custom_call.1} parent=5 // pred_check_branch
        %191 = sbr.rel (%p189) target = $region32
      $region31: #{tpu_custom_call.1} parent=5 // pred_region
        // Predicated region
        $region33: #{tpu_custom_call.1} parent=31 // pred_check
          %p192 = pneg %p98
        $region34: #{tpu_custom_call.1} parent=31 // pred_check_branch
          %194 = sbr.rel (%p192) target = $region36
        $region35: #{tpu_custom_call.1} parent=31 // pred_region
          %p195 = scmp.lt.s32.totalorder %s15, 1
          %s196 = scalar_select %p195, %s15, 1
          %s197 = smul.addr %s196, 4
          %s198 = scalar_lea.vmem %s3, %s197
        $region36: #{tpu_custom_call.1} parent=31 // pred_fallthru
          _
      $region32: #{tpu_custom_call.1} parent=5 // pred_fallthru
        _
      %p199 = scmp.le.s32.totalorder 1, %s15
      %p200 = scmp.lt.s32.totalorder %s15, 3
      %p201 = pnand %p199, %p200
      %p202 = pneg %p201
      // Predicated region
      $region37: #{tpu_custom_call.1} parent=5 // pred_check
        _
      $region38: #{tpu_custom_call.1} parent=5 // pred_check_branch
        %204 = sbr.rel (%p201) target = $region40
      $region39: #{tpu_custom_call.1} parent=5 // pred_region
        %s205 = ssub.s32 %s15, 1
        // Predicated region
        $region41: #{tpu_custom_call.1} parent=39 // pred_check
          %p206 = pneg %p125
        $region42: #{tpu_custom_call.1} parent=39 // pred_check_branch
          %208 = sbr.rel (%p206) target = $region44
        $region43: #{tpu_custom_call.1} parent=39 // pred_region
          %209 = dma.done [#allocation4], 3584
        $region44: #{tpu_custom_call.1} parent=39 // pred_fallthru
          _
        %p210 = pneg %p36
        %p211 = pneg %p33
        %p212 = pneg %p57
        %p213 = pneg %p54
        %p214 = pneg %p78
        %p215 = pneg %p75
        %p216 = scmp.lt.s32.totalorder %s20, 1
        %s217 = scalar_select %p216, %s20, 1
        %s218 = smul.addr %s217, 4
        %s219 = scalar_lea.vmem %s3, %s218
        %p220 = pneg %p104
        %p221 = pneg %p101
        %p222 = pneg %p125
        %p223 = pneg %p122
        %p224 = pneg %p151
        %p225 = pneg %p148
        %s226 = sand.u32 %s138, 1
        %s227 = scalar_lea.sflag [#allocation5], %s226
        %s228 = sand.u32 %s138, 1
        %s229 = scalar_lea.vmem [#allocation6], %s228
        %p230 = scmp.lt.s32.totalorder %s20, 1
        %s231 = scalar_select %p230, %s20, 1
        %s232 = smul.addr %s231, 4
        %s233 = scalar_lea.vmem %s3, %s232
        %236 = vst [vmem:[#allocation2] sm:$0xff] 0
        %237 = vst [vmem:[#allocation2 + $0x8] sm:$0xff] 0
        %238 = vst [vmem:[#allocation2 + $0x10] sm:$0xff] 0
        %239 = vst [vmem:[#allocation2 + $0x18] sm:$0xff] 0
        %240 = vst [vmem:[#allocation2 + $0x20] sm:$0xff] 0
        %241 = vst [vmem:[#allocation2 + $0x28] sm:$0xff] 0
        %242 = vst [vmem:[#allocation2 + $0x30] sm:$0xff] 0
        %243 = vst [vmem:[#allocation2 + $0x38] sm:$0xff] 0
        %244 = vst [vmem:[#allocation2 + $0x40] sm:$0xff] 0
        %245 = vst [vmem:[#allocation2 + $0x48] sm:$0xff] 0
        %246 = vst [vmem:[#allocation2 + $0x50] sm:$0xff] 0
        %247 = vst [vmem:[#allocation2 + $0x58] sm:$0xff] 0
        %248 = vst [vmem:[#allocation2 + $0x60] sm:$0xff] 0
        %249 = vst [vmem:[#allocation2 + $0x68] sm:$0xff] 0
        %250 = vst [vmem:[#allocation2 + $0x70] sm:$0xff] 0
        %251 = vst [vmem:[#allocation2 + $0x78] sm:$0xff] 0
        %vm252 = vcmask 1047559
        %vm253 = vsmask.f32 7966
        %vm254 = vmand %vm252, %vm253
        %v255 = vld [vmem:[#allocation2 + $0x38] sm:$0x80]
        %v256 = vsel %vm254, 1065369472, %v255
        %257 = vst [vmem:[#allocation2 + $0x38] sm:$0x80] %v256
        %vm258 = vcmask 1040384
        %vm259 = vsmask.f32 256
        %vm260 = vmand %vm258, %vm259
        %v261 = vld [vmem:[#allocation2 + $0x60] sm:$0x1]
        %v262 = vsel %vm260, 1065369472, %v261
        %263 = vst [vmem:[#allocation2 + $0x60] sm:$0x1] %v262
        %v264 = vld [vmem:[%s233] sm:$0xf]
        %v265 = vunpack.c.l.bf16 %v264
        %266 = vrot.lane.b32.xlu0 %v265, 1
        %v267 = vpop.permute.xlu0 %266
        %v268 = vld [vmem:[%s0 + $0x4] sm:$0x1]
        %v269 = vlaneseq
        %v270 = vshrl.u32 %v269, 7
        %v271 = vsub.s32 0, %v270
        %v272 = vrot.slane %v268, %v271
        %v273 = vmul.f32 %v267, %v272
        %v274 = vpack.c.bf16 %v273, %v273
        %275 = vst [vmem:[#allocation2] sm:$0xf] %v274
        %v277 = vunpack.c.l.b16 %v264
        %v278 = vpack.c.b16 %v277, %v277
        %280 = vst [vmem:[#allocation2] sm:$0xf0] %v278
        %281 = vrot.lane.b32.xlu0 %v265, 127
        %v282 = vpop.permute.xlu0 %281
        %v283 = vld [vmem:[%s0 + $0x5] sm:$0x1]
        %v284 = vlaneseq
        %v285 = vshrl.u32 %v284, 7
        %v286 = vsub.s32 0, %v285
        %v287 = vrot.slane %v283, %v286
        %v288 = vmul.f32 %v282, %v287
        %v289 = vpack.c.bf16 %v288, %v288
        %290 = vst [vmem:[#allocation2 + $0x8] sm:$0xf] %v289
        %v291 = vld [vmem:[#allocation3] sm:$0xf]
        %v292 = vld [vmem:[#allocation3 + $0x38] sm:$0xf]
        %v293 = vld [vmem:[#allocation3 + $0x70] sm:$0xf]
        %v294 = vld [vmem:[#allocation3 + $0xa8] sm:$0xf]
        %v295 = vld [vmem:[#allocation2] sm:$0xff]
        %v296 = vld [vmem:[#allocation2 + $0x8] sm:$0xff]
        %v297 = vld [vmem:[#allocation2 + $0x10] sm:$0xff]
        %v298 = vld [vmem:[#allocation2 + $0x18] sm:$0xff]
        %v299 = vld [vmem:[#allocation2 + $0x20] sm:$0xff]
        %v300 = vld [vmem:[#allocation2 + $0x28] sm:$0xff]
        %v301 = vld [vmem:[#allocation2 + $0x30] sm:$0xff]
        %v302 = vld [vmem:[#allocation2 + $0x38] sm:$0xff]
        %v307 = vunpack.c.l.b16 %v291
        %v308 = vunpack.c.l.b16 %v292
        %v309 = vunpack.c.l.b16 %v293
        %v310 = vunpack.c.l.b16 %v294
        %v311 = vpack.c.b16 %v308, %v307
        %v312 = vpack.c.b16 %v310, %v309
        %315 = vmatprep.subr.bf16.mxu0 0
        %316 = vmatpush1.bf16.msra.mxu0 %v295
        %317 = vmatprep.subr.bf16.mxu0 0
        %318 = vmatpush1.bf16.msra.mxu0 %v296
        %319 = vmatprep.subr.bf16.mxu0 0
        %320 = vmatpush1.bf16.msra.mxu0 %v297
        %321 = vmatprep.subr.bf16.mxu0 0
        %322 = vmatpush1.bf16.msra.mxu0 %v298
        %323 = vmatprep.subr.bf16.mxu0 0
        %324 = vmatpush1.bf16.msra.mxu0 %v299
        %325 = vmatprep.subr.bf16.mxu0 0
        %326 = vmatpush1.bf16.msra.mxu0 %v300
        %327 = vmatprep.subr.bf16.mxu0 0
        %328 = vmatpush1.bf16.msra.mxu0 %v301
        %329 = vmatprep.subr.bf16.mxu0 0
        %330 = vmatpush1.bf16.msra.mxu0 %v302
        %331 = vmatprep.subr.bf16.mxu0 0
        %332 = vmatpush1.bf16.msra.mxu0 0
        %333 = vmatprep.subr.bf16.mxu0 0
        %334 = vmatpush1.bf16.msra.mxu0 0
        %335 = vmatprep.subr.bf16.mxu0 0
        %336 = vmatpush1.bf16.msra.mxu0 0
        %337 = vmatprep.subr.bf16.mxu0 0
        %338 = vmatpush1.bf16.msra.mxu0 0
        %339 = vmatprep.subr.bf16.mxu0 0
        %340 = vmatpush1.bf16.msra.mxu0 0
        %341 = vmatprep.subr.bf16.mxu0 0
        %342 = vmatpush1.bf16.msra.mxu0 0
        %343 = vmatprep.subr.bf16.mxu0 0
        %344 = vmatpush1.bf16.msra.mxu0 0
        %345 = vmatprep.subr.bf16.mxu0 0
        %346 = vmatpush1.bf16.msra.mxu0 0
        %347 = vmatprep.mubr.bf16.mxu0 0
        %348 = vmatmul.mubr.bf16.gmra.mrb[0].mxu0 %v311
        %v349 = vpop.f32.mrb[0].mxu0
        %v350 = vadd.f32 0.0, %v349
        %v351 = vpop.f32.mrb[0].mxu0
        %v352 = vpop.f32.mrb[0].mxu0
        %v353 = vadd.f32 0.0, %v352
        %v354 = vpop.f32.mrb[0].mxu0
        %355 = vmatprep.mubr.bf16.mxu0 0
        %356 = vmatmul.mubr.bf16.gmra.mrb[0].mxu0 %v312
        %v357 = vpop.f32.mrb[0].mxu0
        %v358 = vadd.f32 0.0, %v357
        %v359 = vpop.f32.mrb[0].mxu0
        %v360 = vpop.f32.mrb[0].mxu0
        %v361 = vadd.f32 0.0, %v360
        %v362 = vpop.f32.mrb[0].mxu0
        %363 = vdwg.mxu0
        %v364 = vmax.f32 %v350, 0.0
        %v365 = vmax.f32 %v353, 0.0
        %v366 = vmax.f32 %v358, 0.0
        %v367 = vmax.f32 %v361, 0.0
        %368 = vrot.lane.b32.xlu0 %v364, 1
        %v369 = vpop.permute.xlu0 %368
        %370 = vrot.lane.b32.xlu0 %v365, 1
        %v371 = vpop.permute.xlu0 %370
        %372 = vrot.lane.b32.xlu0 %v366, 1
        %v373 = vpop.permute.xlu0 %372
        %374 = vrot.lane.b32.xlu0 %v367, 1
        %v375 = vpop.permute.xlu0 %374
        %v376 = vld [vmem:[%s0 + $0x4] sm:$0x1]
        %v377 = vlaneseq
        %v378 = vshrl.u32 %v377, 7
        %v379 = vsub.s32 0, %v378
        %v380 = vrot.slane %v376, %v379
        %v381 = vmul.f32 %v369, %v380
        %v382 = vmul.f32 %v371, %v380
        %v383 = vmul.f32 %v373, %v380
        %v384 = vmul.f32 %v375, %v380
        %v385 = vpack.c.bf16 %v382, %v381
        %v386 = vpack.c.bf16 %v384, %v383
        %387 = vst [vmem:[#allocation2] sm:$0xff] %v385
        %388 = vst [vmem:[#allocation2 + $0x8] sm:$0xff] %v386
        %v389 = vpack.c.bf16 %v365, %v364
        %v390 = vpack.c.bf16 %v367, %v366
        %391 = vst [vmem:[#allocation2 + $0x10] sm:$0xff] %v389
        %392 = vst [vmem:[#allocation2 + $0x18] sm:$0xff] %v390
        %393 = vrot.lane.b32.xlu0 %v364, 127
        %v394 = vpop.permute.xlu0 %393
        %395 = vrot.lane.b32.xlu0 %v365, 127
        %v396 = vpop.permute.xlu0 %395
        %397 = vrot.lane.b32.xlu0 %v366, 127
        %v398 = vpop.permute.xlu0 %397
        %399 = vrot.lane.b32.xlu0 %v367, 127
        %v400 = vpop.permute.xlu0 %399
        %v401 = vld [vmem:[%s0 + $0x5] sm:$0x1]
        %v402 = vlaneseq
        %v403 = vshrl.u32 %v402, 7
        %v404 = vsub.s32 0, %v403
        %v405 = vrot.slane %v401, %v404
        %v406 = vmul.f32 %v394, %v405
        %v407 = vmul.f32 %v396, %v405
        %v408 = vmul.f32 %v398, %v405
        %v409 = vmul.f32 %v400, %v405
        %v410 = vpack.c.bf16 %v407, %v406
        %v411 = vpack.c.bf16 %v409, %v408
        %412 = vst [vmem:[#allocation2 + $0x20] sm:$0xff] %v410
        %413 = vst [vmem:[#allocation2 + $0x28] sm:$0xff] %v411
        %v414 = vld [vmem:[#allocation3 + $0x4] sm:$0xf]
        %v415 = vld [vmem:[#allocation3 + $0x3c] sm:$0xf]
        %v416 = vld [vmem:[#allocation3 + $0x74] sm:$0xf]
        %v417 = vld [vmem:[#allocation3 + $0xac] sm:$0xf]
        %v418 = vld [vmem:[#allocation2] sm:$0xff]
        %v419 = vld [vmem:[#allocation2 + $0x8] sm:$0xff]
        %v420 = vld [vmem:[#allocation2 + $0x10] sm:$0xff]
        %v421 = vld [vmem:[#allocation2 + $0x18] sm:$0xff]
        %v422 = vld [vmem:[#allocation2 + $0x20] sm:$0xff]
        %v423 = vld [vmem:[#allocation2 + $0x28] sm:$0xff]
        %v424 = vld [vmem:[#allocation2 + $0x30] sm:$0xff]
        %v425 = vld [vmem:[#allocation2 + $0x38] sm:$0xff]
        %v430 = vunpack.c.l.b16 %v414
        %v431 = vunpack.c.l.b16 %v415
        %v432 = vunpack.c.l.b16 %v416
        %v433 = vunpack.c.l.b16 %v417
        %v434 = vpack.c.b16 %v431, %v430
        %v435 = vpack.c.b16 %v433, %v432
        %438 = vmatprep.subr.bf16.mxu0 0
        %439 = vmatpush1.bf16.msra.mxu0 %v418
        %440 = vmatprep.subr.bf16.mxu0 0
        %441 = vmatpush1.bf16.msra.mxu0 %v419
        %442 = vmatprep.subr.bf16.mxu0 0
        %443 = vmatpush1.bf16.msra.mxu0 %v420
        %444 = vmatprep.subr.bf16.mxu0 0
        %445 = vmatpush1.bf16.msra.mxu0 %v421
        %446 = vmatprep.subr.bf16.mxu0 0
        %447 = vmatpush1.bf16.msra.mxu0 %v422
        %448 = vmatprep.subr.bf16.mxu0 0
        %449 = vmatpush1.bf16.msra.mxu0 %v423
        %450 = vmatprep.subr.bf16.mxu0 0
        %451 = vmatpush1.bf16.msra.mxu0 %v424
        %452 = vmatprep.subr.bf16.mxu0 0
        %453 = vmatpush1.bf16.msra.mxu0 %v425
        %454 = vmatprep.subr.bf16.mxu0 0
        %455 = vmatpush1.bf16.msra.mxu0 0
        %456 = vmatprep.subr.bf16.mxu0 0
        %457 = vmatpush1.bf16.msra.mxu0 0
        %458 = vmatprep.subr.bf16.mxu0 0
        %459 = vmatpush1.bf16.msra.mxu0 0
        %460 = vmatprep.subr.bf16.mxu0 0
        %461 = vmatpush1.bf16.msra.mxu0 0
        %462 = vmatprep.subr.bf16.mxu0 0
        %463 = vmatpush1.bf16.msra.mxu0 0
        %464 = vmatprep.subr.bf16.mxu0 0
        %465 = vmatpush1.bf16.msra.mxu0 0
        %466 = vmatprep.subr.bf16.mxu0 0
        %467 = vmatpush1.bf16.msra.mxu0 0
        %468 = vmatprep.subr.bf16.mxu0 0
        %469 = vmatpush1.bf16.msra.mxu0 0
        %470 = vmatprep.mubr.bf16.mxu0 0
        %471 = vmatmul.mubr.bf16.gmra.mrb[0].mxu0 %v434
        %v472 = vpop.f32.mrb[0].mxu0
        %v473 = vadd.f32 0.0, %v472
        %v474 = vpop.f32.mrb[0].mxu0
        %v475 = vpop.f32.mrb[0].mxu0
        %v476 = vadd.f32 0.0, %v475
        %v477 = vpop.f32.mrb[0].mxu0
        %478 = vmatprep.mubr.bf16.mxu0 0
        %479 = vmatmul.mubr.bf16.gmra.mrb[0].mxu0 %v435
        %v480 = vpop.f32.mrb[0].mxu0
        %v481 = vadd.f32 0.0, %v480
        %v482 = vpop.f32.mrb[0].mxu0
        %v483 = vpop.f32.mrb[0].mxu0
        %v484 = vadd.f32 0.0, %v483
        %v485 = vpop.f32.mrb[0].mxu0
        %486 = vdwg.mxu0
        %v487 = vmax.f32 %v473, 0.0
        %v488 = vmax.f32 %v476, 0.0
        %v489 = vmax.f32 %v481, 0.0
        %v490 = vmax.f32 %v484, 0.0
        %491 = vrot.lane.b32.xlu0 %v487, 1
        %v492 = vpop.permute.xlu0 %491
        %493 = vrot.lane.b32.xlu0 %v488, 1
        %v494 = vpop.permute.xlu0 %493
        %495 = vrot.lane.b32.xlu0 %v489, 1
        %v496 = vpop.permute.xlu0 %495
        %497 = vrot.lane.b32.xlu0 %v490, 1
        %v498 = vpop.permute.xlu0 %497
        %v499 = vld [vmem:[%s0 + $0x4] sm:$0x1]
        %v500 = vlaneseq
        %v501 = vshrl.u32 %v500, 7
        %v502 = vsub.s32 0, %v501
        %v503 = vrot.slane %v499, %v502
        %v504 = vmul.f32 %v492, %v503
        %v505 = vmul.f32 %v494, %v503
        %v506 = vmul.f32 %v496, %v503
        %v507 = vmul.f32 %v498, %v503
        %v508 = vpack.c.bf16 %v505, %v504
        %v509 = vpack.c.bf16 %v507, %v506
        %510 = vst [vmem:[#allocation2] sm:$0xff] %v508
        %511 = vst [vmem:[#allocation2 + $0x8] sm:$0xff] %v509
        %v512 = vpack.c.bf16 %v488, %v487
        %v513 = vpack.c.bf16 %v490, %v489
        %514 = vst [vmem:[#allocation2 + $0x10] sm:$0xff] %v512
        %515 = vst [vmem:[#allocation2 + $0x18] sm:$0xff] %v513
        %516 = vrot.lane.b32.xlu0 %v487, 127
        %v517 = vpop.permute.xlu0 %516
        %518 = vrot.lane.b32.xlu0 %v488, 127
        %v519 = vpop.permute.xlu0 %518
        %520 = vrot.lane.b32.xlu0 %v489, 127
        %v521 = vpop.permute.xlu0 %520
        %522 = vrot.lane.b32.xlu0 %v490, 127
        %v523 = vpop.permute.xlu0 %522
        %v524 = vld [vmem:[%s0 + $0x5] sm:$0x1]
        %v525 = vlaneseq
        %v526 = vshrl.u32 %v525, 7
        %v527 = vsub.s32 0, %v526
        %v528 = vrot.slane %v524, %v527
        %v529 = vmul.f32 %v517, %v528
        %v530 = vmul.f32 %v519, %v528
        %v531 = vmul.f32 %v521, %v528
        %v532 = vmul.f32 %v523, %v528
        %v533 = vpack.c.bf16 %v530, %v529
        %v534 = vpack.c.bf16 %v532, %v531
        %535 = vst [vmem:[#allocation2 + $0x20] sm:$0xff] %v533
        %536 = vst [vmem:[#allocation2 + $0x28] sm:$0xff] %v534
        %v537 = vld [vmem:[#allocation3 + $0x8] sm:$0xf]
        %v538 = vld [vmem:[#allocation3 + $0x40] sm:$0xf]
        %v539 = vld [vmem:[#allocation3 + $0x78] sm:$0xf]
        %v540 = vld [vmem:[#allocation3 + $0xb0] sm:$0xf]
        %v541 = vld [vmem:[#allocation2] sm:$0xff]
        %v542 = vld [vmem:[#allocation2 + $0x8] sm:$0xff]
        %v543 = vld [vmem:[#allocation2 + $0x10] sm:$0xff]
        %v544 = vld [vmem:[#allocation2 + $0x18] sm:$0xff]
        %v545 = vld [vmem:[#allocation2 + $0x20] sm:$0xff]
        %v546 = vld [vmem:[#allocation2 + $0x28] sm:$0xff]
        %v547 = vld [vmem:[#allocation2 + $0x30] sm:$0xff]
        %v548 = vld [vmem:[#allocation2 + $0x38] sm:$0xff]
        %v553 = vunpack.c.l.b16 %v537
        %v554 = vunpack.c.l.b16 %v538
        %v555 = vunpack.c.l.b16 %v539
        %v556 = vunpack.c.l.b16 %v540
        %v557 = vpack.c.b16 %v554, %v553
        %v558 = vpack.c.b16 %v556, %v555
        %561 = vmatprep.subr.bf16.mxu0 0
        %562 = vmatpush1.bf16.msra.mxu0 %v541
        %563 = vmatprep.subr.bf16.mxu0 0
        %564 = vmatpush1.bf16.msra.mxu0 %v542
        %565 = vmatprep.subr.bf16.mxu0 0
        %566 = vmatpush1.bf16.msra.mxu0 %v543
        %567 = vmatprep.subr.bf16.mxu0 0
        %568 = vmatpush1.bf16.msra.mxu0 %v544
        %569 = vmatprep.subr.bf16.mxu0 0
        %570 = vmatpush1.bf16.msra.mxu0 %v545
        %571 = vmatprep.subr.bf16.mxu0 0
        %572 = vmatpush1.bf16.msra.mxu0 %v546
        %573 = vmatprep.subr.bf16.mxu0 0
        %574 = vmatpush1.bf16.msra.mxu0 %v547
        %575 = vmatprep.subr.bf16.mxu0 0
        %576 = vmatpush1.bf16.msra.mxu0 %v548
        %577 = vmatprep.subr.bf16.mxu0 0
        %578 = vmatpush1.bf16.msra.mxu0 0
        %579 = vmatprep.subr.bf16.mxu0 0
        %580 = vmatpush1.bf16.msra.mxu0 0
        %581 = vmatprep.subr.bf16.mxu0 0
        %582 = vmatpush1.bf16.msra.mxu0 0
        %583 = vmatprep.subr.bf16.mxu0 0
        %584 = vmatpush1.bf16.msra.mxu0 0
        %585 = vmatprep.subr.bf16.mxu0 0
        %586 = vmatpush1.bf16.msra.mxu0 0
        %587 = vmatprep.subr.bf16.mxu0 0
        %588 = vmatpush1.bf16.msra.mxu0 0
        %589 = vmatprep.subr.bf16.mxu0 0
        %590 = vmatpush1.bf16.msra.mxu0 0
        %591 = vmatprep.subr.bf16.mxu0 0
        %592 = vmatpush1.bf16.msra.mxu0 0
        %593 = vmatprep.mubr.bf16.mxu0 0
        %594 = vmatmul.mubr.bf16.gmra.mrb[0].mxu0 %v557
        %v595 = vpop.f32.mrb[0].mxu0
        %v596 = vadd.f32 0.0, %v595
        %v597 = vpop.f32.mrb[0].mxu0
        %v598 = vpop.f32.mrb[0].mxu0
        %v599 = vadd.f32 0.0, %v598
        %v600 = vpop.f32.mrb[0].mxu0
        %601 = vmatprep.mubr.bf16.mxu0 0
        %602 = vmatmul.mubr.bf16.gmra.mrb[0].mxu0 %v558
        %v603 = vpop.f32.mrb[0].mxu0
        %v604 = vadd.f32 0.0, %v603
        %v605 = vpop.f32.mrb[0].mxu0
        %v606 = vpop.f32.mrb[0].mxu0
        %v607 = vadd.f32 0.0, %v606
        %v608 = vpop.f32.mrb[0].mxu0
        %609 = vdwg.mxu0
        %v610 = vmax.f32 %v596, 0.0
        %v611 = vmax.f32 %v599, 0.0
        %v612 = vmax.f32 %v604, 0.0
        %v613 = vmax.f32 %v607, 0.0
        %614 = vrot.lane.b32.xlu0 %v610, 1
        %v615 = vpop.permute.xlu0 %614
        %616 = vrot.lane.b32.xlu0 %v611, 1
        %v617 = vpop.permute.xlu0 %616
        %618 = vrot.lane.b32.xlu0 %v612, 1
        %v619 = vpop.permute.xlu0 %618
        %620 = vrot.lane.b32.xlu0 %v613, 1
        %v621 = vpop.permute.xlu0 %620
        %v622 = vld [vmem:[%s0 + $0x4] sm:$0x1]
        %v623 = vlaneseq
        %v624 = vshrl.u32 %v623, 7
        %v625 = vsub.s32 0, %v624
        %v626 = vrot.slane %v622, %v625
        %v627 = vmul.f32 %v615, %v626
        %v628 = vmul.f32 %v617, %v626
        %v629 = vmul.f32 %v619, %v626
        %v630 = vmul.f32 %v621, %v626
        %v631 = vpack.c.bf16 %v628, %v627
        %v632 = vpack.c.bf16 %v630, %v629
        %633 = vst [vmem:[#allocation2] sm:$0xff] %v631
        %634 = vst [vmem:[#allocation2 + $0x8] sm:$0xff] %v632
        %v635 = vpack.c.bf16 %v611, %v610
        %v636 = vpack.c.bf16 %v613, %v612
        %637 = vst [vmem:[#allocation2 + $0x10] sm:$0xff] %v635
        %638 = vst [vmem:[#allocation2 + $0x18] sm:$0xff] %v636
        %639 = vrot.lane.b32.xlu0 %v610, 127
        %v640 = vpop.permute.xlu0 %639
        %641 = vrot.lane.b32.xlu0 %v611, 127
        %v642 = vpop.permute.xlu0 %641
        %643 = vrot.lane.b32.xlu0 %v612, 127
        %v644 = vpop.permute.xlu0 %643
        %645 = vrot.lane.b32.xlu0 %v613, 127
        %v646 = vpop.permute.xlu0 %645
        %v647 = vld [vmem:[%s0 + $0x5] sm:$0x1]
        %v648 = vlaneseq
        %v649 = vshrl.u32 %v648, 7
        %v650 = vsub.s32 0, %v649
        %v651 = vrot.slane %v647, %v650
        %v652 = vmul.f32 %v640, %v651
        %v653 = vmul.f32 %v642, %v651
        %v654 = vmul.f32 %v644, %v651
        %v655 = vmul.f32 %v646, %v651
        %v656 = vpack.c.bf16 %v653, %v652
        %v657 = vpack.c.bf16 %v655, %v654
        %658 = vst [vmem:[#allocation2 + $0x20] sm:$0xff] %v656
        %659 = vst [vmem:[#allocation2 + $0x28] sm:$0xff] %v657
        %v660 = vld [vmem:[#allocation3 + $0xc] sm:$0xf]
        %v661 = vld [vmem:[#allocation3 + $0x44] sm:$0xf]
        %v662 = vld [vmem:[#allocation3 + $0x7c] sm:$0xf]
        %v663 = vld [vmem:[#allocation3 + $0xb4] sm:$0xf]
        %v664 = vld [vmem:[#allocation2] sm:$0xff]
        %v665 = vld [vmem:[#allocation2 + $0x8] sm:$0xff]
        %v666 = vld [vmem:[#allocation2 + $0x10] sm:$0xff]
        %v667 = vld [vmem:[#allocation2 + $0x18] sm:$0xff]
        %v668 = vld [vmem:[#allocation2 + $0x20] sm:$0xff]
        %v669 = vld [vmem:[#allocation2 + $0x28] sm:$0xff]
        %v670 = vld [vmem:[#allocation2 + $0x30] sm:$0xff]
        %v671 = vld [vmem:[#allocation2 + $0x38] sm:$0xff]
        %v676 = vunpack.c.l.b16 %v660
        %v677 = vunpack.c.l.b16 %v661
        %v678 = vunpack.c.l.b16 %v662
        %v679 = vunpack.c.l.b16 %v663
        %v680 = vpack.c.b16 %v677, %v676
        %v681 = vpack.c.b16 %v679, %v678
        %684 = vmatprep.subr.bf16.mxu0 0
        %685 = vmatpush1.bf16.msra.mxu0 %v664
        %686 = vmatprep.subr.bf16.mxu0 0
        %687 = vmatpush1.bf16.msra.mxu0 %v665
        %688 = vmatprep.subr.bf16.mxu0 0
        %689 = vmatpush1.bf16.msra.mxu0 %v666
        %690 = vmatprep.subr.bf16.mxu0 0
        %691 = vmatpush1.bf16.msra.mxu0 %v667
        %692 = vmatprep.subr.bf16.mxu0 0
        %693 = vmatpush1.bf16.msra.mxu0 %v668
        %694 = vmatprep.subr.bf16.mxu0 0
        %695 = vmatpush1.bf16.msra.mxu0 %v669
        %696 = vmatprep.subr.bf16.mxu0 0
        %697 = vmatpush1.bf16.msra.mxu0 %v670
        %698 = vmatprep.subr.bf16.mxu0 0
        %699 = vmatpush1.bf16.msra.mxu0 %v671
        %700 = vmatprep.subr.bf16.mxu0 0
        %701 = vmatpush1.bf16.msra.mxu0 0
        %702 = vmatprep.subr.bf16.mxu0 0
        %703 = vmatpush1.bf16.msra.mxu0 0
        %704 = vmatprep.subr.bf16.mxu0 0
        %705 = vmatpush1.bf16.msra.mxu0 0
        %706 = vmatprep.subr.bf16.mxu0 0
        %707 = vmatpush1.bf16.msra.mxu0 0
        %708 = vmatprep.subr.bf16.mxu0 0
        %709 = vmatpush1.bf16.msra.mxu0 0
        %710 = vmatprep.subr.bf16.mxu0 0
        %711 = vmatpush1.bf16.msra.mxu0 0
        %712 = vmatprep.subr.bf16.mxu0 0
        %713 = vmatpush1.bf16.msra.mxu0 0
        %714 = vmatprep.subr.bf16.mxu0 0
        %715 = vmatpush1.bf16.msra.mxu0 0
        %716 = vmatprep.mubr.bf16.mxu0 0
        %717 = vmatmul.mubr.bf16.gmra.mrb[0].mxu0 %v680
        %v718 = vpop.f32.mrb[0].mxu0
        %v719 = vadd.f32 0.0, %v718
        %v720 = vpop.f32.mrb[0].mxu0
        %v721 = vpop.f32.mrb[0].mxu0
        %v722 = vadd.f32 0.0, %v721
        %v723 = vpop.f32.mrb[0].mxu0
        %724 = vmatprep.mubr.bf16.mxu0 0
        %725 = vmatmul.mubr.bf16.gmra.mrb[0].mxu0 %v681
        %v726 = vpop.f32.mrb[0].mxu0
        %v727 = vadd.f32 0.0, %v726
        %v728 = vpop.f32.mrb[0].mxu0
        %v729 = vpop.f32.mrb[0].mxu0
        %v730 = vadd.f32 0.0, %v729
        %v731 = vpop.f32.mrb[0].mxu0
        %732 = vdwg.mxu0
        %v733 = vmax.f32 %v719, 0.0
        %v734 = vmax.f32 %v722, 0.0
        %v735 = vmax.f32 %v727, 0.0
        %v736 = vmax.f32 %v730, 0.0
        %v737 = vpack.c.bf16 %v734, %v733
        %v738 = vpack.c.bf16 %v736, %v735
        %739 = vst [vmem:[#allocation2] sm:$0xff] %v737
        %740 = vst [vmem:[#allocation2 + $0x8] sm:$0xff] %v738
        %v741 = vld [vmem:[#allocation3 + $0x10] sm:$0xf]
        %v742 = vld [vmem:[#allocation3 + $0x48] sm:$0xf]
        %v743 = vld [vmem:[#allocation3 + $0x80] sm:$0xf]
        %v744 = vld [vmem:[#allocation3 + $0xb8] sm:$0xf]
        %v745 = vld [vmem:[#allocation2] sm:$0xff]
        %v746 = vld [vmem:[#allocation2 + $0x8] sm:$0xff]
        %v747 = vld [vmem:[#allocation2 + $0x10] sm:$0xff]
        %v748 = vld [vmem:[#allocation2 + $0x18] sm:$0xff]
        %v749 = vld [vmem:[#allocation2 + $0x20] sm:$0xff]
        %v750 = vld [vmem:[#allocation2 + $0x28] sm:$0xff]
        %v751 = vld [vmem:[#allocation2 + $0x30] sm:$0xff]
        %v752 = vld [vmem:[#allocation2 + $0x38] sm:$0xff]
        %v757 = vunpack.c.l.b16 %v741
        %v758 = vunpack.c.l.b16 %v742
        %v759 = vunpack.c.l.b16 %v743
        %v760 = vunpack.c.l.b16 %v744
        %v761 = vpack.c.b16 %v758, %v757
        %v762 = vpack.c.b16 %v760, %v759
        %765 = vmatprep.subr.bf16.mxu0 0
        %766 = vmatpush1.bf16.msra.mxu0 %v745
        %767 = vmatprep.subr.bf16.mxu0 0
        %768 = vmatpush1.bf16.msra.mxu0 %v746
        %769 = vmatprep.subr.bf16.mxu0 0
        %770 = vmatpush1.bf16.msra.mxu0 %v747
        %771 = vmatprep.subr.bf16.mxu0 0
        %772 = vmatpush1.bf16.msra.mxu0 %v748
        %773 = vmatprep.subr.bf16.mxu0 0
        %774 = vmatpush1.bf16.msra.mxu0 %v749
        %775 = vmatprep.subr.bf16.mxu0 0
        %776 = vmatpush1.bf16.msra.mxu0 %v750
        %777 = vmatprep.subr.bf16.mxu0 0
        %778 = vmatpush1.bf16.msra.mxu0 %v751
        %779 = vmatprep.subr.bf16.mxu0 0
        %780 = vmatpush1.bf16.msra.mxu0 %v752
        %781 = vmatprep.subr.bf16.mxu0 0
        %782 = vmatpush1.bf16.msra.mxu0 0
        %783 = vmatprep.subr.bf16.mxu0 0
        %784 = vmatpush1.bf16.msra.mxu0 0
        %785 = vmatprep.subr.bf16.mxu0 0
        %786 = vmatpush1.bf16.msra.mxu0 0
        %787 = vmatprep.subr.bf16.mxu0 0
        %788 = vmatpush1.bf16.msra.mxu0 0
        %789 = vmatprep.subr.bf16.mxu0 0
        %790 = vmatpush1.bf16.msra.mxu0 0
        %791 = vmatprep.subr.bf16.mxu0 0
        %792 = vmatpush1.bf16.msra.mxu0 0
        %793 = vmatprep.subr.bf16.mxu0 0
        %794 = vmatpush1.bf16.msra.mxu0 0
        %795 = vmatprep.subr.bf16.mxu0 0
        %796 = vmatpush1.bf16.msra.mxu0 0
        %797 = vmatprep.mubr.bf16.mxu0 0
        %798 = vmatmul.mubr.bf16.gmra.mrb[0].mxu0 %v761
        %v799 = vpop.f32.mrb[0].mxu0
        %v800 = vadd.f32 0.0, %v799
        %v801 = vpop.f32.mrb[0].mxu0
        %v802 = vpop.f32.mrb[0].mxu0
        %v803 = vadd.f32 0.0, %v802
        %v804 = vpop.f32.mrb[0].mxu0
        %805 = vmatprep.mubr.bf16.mxu0 0
        %806 = vmatmul.mubr.bf16.gmra.mrb[0].mxu0 %v762
        %v807 = vpop.f32.mrb[0].mxu0
        %v808 = vadd.f32 0.0, %v807
        %v809 = vpop.f32.mrb[0].mxu0
        %v810 = vpop.f32.mrb[0].mxu0
        %v811 = vadd.f32 0.0, %v810
        %v812 = vpop.f32.mrb[0].mxu0
        %813 = vdwg.mxu0
        %v814 = vmax.f32 %v800, 0.0
        %v815 = vmax.f32 %v803, 0.0
        %v816 = vmax.f32 %v808, 0.0
        %v817 = vmax.f32 %v811, 0.0
        %818 = vrot.lane.b32.xlu0 %v733, 6
        %v819 = vpop.permute.xlu0 %818
        %820 = vrot.lane.b32.xlu0 %v734, 6
        %v821 = vpop.permute.xlu0 %820
        %822 = vrot.lane.b32.xlu0 %v735, 6
        %v823 = vpop.permute.xlu0 %822
        %824 = vrot.lane.b32.xlu0 %v736, 6
        %v825 = vpop.permute.xlu0 %824
        %v826 = vld [vmem:[%s0 + $0x3] sm:$0x1]
        %v827 = vlaneseq
        %v828 = vshrl.u32 %v827, 7
        %v829 = vsub.s32 0, %v828
        %v830 = vrot.slane %v826, %v829
        %v831 = vmul.f32 %v819, %v830
        %v832 = vmul.f32 %v821, %v830
        %v833 = vmul.f32 %v823, %v830
        %v834 = vmul.f32 %v825, %v830
        %v835 = vpack.c.bf16 %v832, %v831
        %v836 = vpack.c.bf16 %v834, %v833
        %837 = vst [vmem:[#allocation2] sm:$0xff] %v835
        %838 = vst [vmem:[#allocation2 + $0x8] sm:$0xff] %v836
        %839 = vst [vmem:[#allocation2 + $0x10] sm:$0xff] %v737
        %840 = vst [vmem:[#allocation2 + $0x18] sm:$0xff] %v738
        %841 = vrot.lane.b32.xlu0 %v733, 122
        %v842 = vpop.permute.xlu0 %841
        %843 = vrot.lane.b32.xlu0 %v734, 122
        %v844 = vpop.permute.xlu0 %843
        %845 = vrot.lane.b32.xlu0 %v735, 122
        %v846 = vpop.permute.xlu0 %845
        %847 = vrot.lane.b32.xlu0 %v736, 122
        %v848 = vpop.permute.xlu0 %847
        %v849 = vld [vmem:[%s0 + $0x6] sm:$0x1]
        %v850 = vlaneseq
        %v851 = vshrl.u32 %v850, 7
        %v852 = vsub.s32 0, %v851
        %v853 = vrot.slane %v849, %v852
        %v854 = vmul.f32 %v842, %v853
        %v855 = vmul.f32 %v844, %v853
        %v856 = vmul.f32 %v846, %v853
        %v857 = vmul.f32 %v848, %v853
        %v858 = vpack.c.bf16 %v855, %v854
        %v859 = vpack.c.bf16 %v857, %v856
        %860 = vst [vmem:[#allocation2 + $0x20] sm:$0xff] %v858
        %861 = vst [vmem:[#allocation2 + $0x28] sm:$0xff] %v859
        %v862 = vld [vmem:[#allocation3 + $0x14] sm:$0xf]
        %v863 = vld [vmem:[#allocation3 + $0x4c] sm:$0xf]
        %v864 = vld [vmem:[#allocation3 + $0x84] sm:$0xf]
        %v865 = vld [vmem:[#allocation3 + $0xbc] sm:$0xf]
        %v866 = vld [vmem:[#allocation2] sm:$0xff]
        %v867 = vld [vmem:[#allocation2 + $0x8] sm:$0xff]
        %v868 = vld [vmem:[#allocation2 + $0x10] sm:$0xff]
        %v869 = vld [vmem:[#allocation2 + $0x18] sm:$0xff]
        %v870 = vld [vmem:[#allocation2 + $0x20] sm:$0xff]
        %v871 = vld [vmem:[#allocation2 + $0x28] sm:$0xff]
        %v872 = vld [vmem:[#allocation2 + $0x30] sm:$0xff]
        %v873 = vld [vmem:[#allocation2 + $0x38] sm:$0xff]
        %v878 = vunpack.c.l.b16 %v862
        %v879 = vunpack.c.l.b16 %v863
        %v880 = vunpack.c.l.b16 %v864
        %v881 = vunpack.c.l.b16 %v865
        %v882 = vpack.c.b16 %v879, %v878
        %v883 = vpack.c.b16 %v881, %v880
        %886 = vmatprep.subr.bf16.mxu0 0
        %887 = vmatpush1.bf16.msra.mxu0 %v866
        %888 = vmatprep.subr.bf16.mxu0 0
        %889 = vmatpush1.bf16.msra.mxu0 %v867
        %890 = vmatprep.subr.bf16.mxu0 0
        %891 = vmatpush1.bf16.msra.mxu0 %v868
        %892 = vmatprep.subr.bf16.mxu0 0
        %893 = vmatpush1.bf16.msra.mxu0 %v869
        %894 = vmatprep.subr.bf16.mxu0 0
        %895 = vmatpush1.bf16.msra.mxu0 %v870
        %896 = vmatprep.subr.bf16.mxu0 0
        %897 = vmatpush1.bf16.msra.mxu0 %v871
        %898 = vmatprep.subr.bf16.mxu0 0
        %899 = vmatpush1.bf16.msra.mxu0 %v872
        %900 = vmatprep.subr.bf16.mxu0 0
        %901 = vmatpush1.bf16.msra.mxu0 %v873
        %902 = vmatprep.subr.bf16.mxu0 0
        %903 = vmatpush1.bf16.msra.mxu0 0
        %904 = vmatprep.subr.bf16.mxu0 0
        %905 = vmatpush1.bf16.msra.mxu0 0
        %906 = vmatprep.subr.bf16.mxu0 0
        %907 = vmatpush1.bf16.msra.mxu0 0
        %908 = vmatprep.subr.bf16.mxu0 0
        %909 = vmatpush1.bf16.msra.mxu0 0
        %910 = vmatprep.subr.bf16.mxu0 0
        %911 = vmatpush1.bf16.msra.mxu0 0
        %912 = vmatprep.subr.bf16.mxu0 0
        %913 = vmatpush1.bf16.msra.mxu0 0
        %914 = vmatprep.subr.bf16.mxu0 0
        %915 = vmatpush1.bf16.msra.mxu0 0
        %916 = vmatprep.subr.bf16.mxu0 0
        %917 = vmatpush1.bf16.msra.mxu0 0
        %918 = vmatprep.mubr.bf16.mxu0 0
        %919 = vmatmul.mubr.bf16.gmra.mrb[0].mxu0 %v882
        %v920 = vpop.f32.mrb[0].mxu0
        %v921 = vadd.f32 0.0, %v920
        %v922 = vpop.f32.mrb[0].mxu0
        %v923 = vpop.f32.mrb[0].mxu0
        %v924 = vadd.f32 0.0, %v923
        %v925 = vpop.f32.mrb[0].mxu0
        %926 = vmatprep.mubr.bf16.mxu0 0
        %927 = vmatmul.mubr.bf16.gmra.mrb[0].mxu0 %v883
        %v928 = vpop.f32.mrb[0].mxu0
        %v929 = vadd.f32 0.0, %v928
        %v930 = vpop.f32.mrb[0].mxu0
        %v931 = vpop.f32.mrb[0].mxu0
        %v932 = vadd.f32 0.0, %v931
        %v933 = vpop.f32.mrb[0].mxu0
        %934 = vdwg.mxu0
        %v935 = vmax.f32 %v921, 0.0
        %v936 = vmax.f32 %v924, 0.0
        %v937 = vmax.f32 %v929, 0.0
        %v938 = vmax.f32 %v932, 0.0
        %939 = vrot.lane.b32.xlu0 %v733, 12
        %v940 = vpop.permute.xlu0 %939
        %941 = vrot.lane.b32.xlu0 %v734, 12
        %v942 = vpop.permute.xlu0 %941
        %943 = vrot.lane.b32.xlu0 %v735, 12
        %v944 = vpop.permute.xlu0 %943
        %945 = vrot.lane.b32.xlu0 %v736, 12
        %v946 = vpop.permute.xlu0 %945
        %v947 = vld [vmem:[%s0 + $0x2] sm:$0x1]
        %v948 = vlaneseq
        %v949 = vshrl.u32 %v948, 7
        %v950 = vsub.s32 0, %v949
        %v951 = vrot.slane %v947, %v950
        %v952 = vmul.f32 %v940, %v951
        %v953 = vmul.f32 %v942, %v951
        %v954 = vmul.f32 %v944, %v951
        %v955 = vmul.f32 %v946, %v951
        %v956 = vpack.c.bf16 %v953, %v952
        %v957 = vpack.c.bf16 %v955, %v954
        %958 = vst [vmem:[#allocation2] sm:$0xff] %v956
        %959 = vst [vmem:[#allocation2 + $0x8] sm:$0xff] %v957
        %960 = vst [vmem:[#allocation2 + $0x10] sm:$0xff] %v737
        %961 = vst [vmem:[#allocation2 + $0x18] sm:$0xff] %v738
        %962 = vrot.lane.b32.xlu0 %v733, 116
        %v963 = vpop.permute.xlu0 %962
        %964 = vrot.lane.b32.xlu0 %v734, 116
        %v965 = vpop.permute.xlu0 %964
        %966 = vrot.lane.b32.xlu0 %v735, 116
        %v967 = vpop.permute.xlu0 %966
        %968 = vrot.lane.b32.xlu0 %v736, 116
        %v969 = vpop.permute.xlu0 %968
        %v970 = vld [vmem:[%s0 + $0x7] sm:$0x1]
        %v971 = vlaneseq
        %v972 = vshrl.u32 %v971, 7
        %v973 = vsub.s32 0, %v972
        %v974 = vrot.slane %v970, %v973
        %v975 = vmul.f32 %v963, %v974
        %v976 = vmul.f32 %v965, %v974
        %v977 = vmul.f32 %v967, %v974
        %v978 = vmul.f32 %v969, %v974
        %v979 = vpack.c.bf16 %v976, %v975
        %v980 = vpack.c.bf16 %v978, %v977
        %981 = vst [vmem:[#allocation2 + $0x20] sm:$0xff] %v979
        %982 = vst [vmem:[#allocation2 + $0x28] sm:$0xff] %v980
        %v983 = vld [vmem:[#allocation3 + $0x18] sm:$0xf]
        %v984 = vld [vmem:[#allocation3 + $0x50] sm:$0xf]
        %v985 = vld [vmem:[#allocation3 + $0x88] sm:$0xf]
        %v986 = vld [vmem:[#allocation3 + $0xc0] sm:$0xf]
        %v987 = vld [vmem:[#allocation2] sm:$0xff]
        %v988 = vld [vmem:[#allocation2 + $0x8] sm:$0xff]
        %v989 = vld [vmem:[#allocation2 + $0x10] sm:$0xff]
        %v990 = vld [vmem:[#allocation2 + $0x18] sm:$0xff]
        %v991 = vld [vmem:[#allocation2 + $0x20] sm:$0xff]
        %v992 = vld [vmem:[#allocation2 + $0x28] sm:$0xff]
        %v993 = vld [vmem:[#allocation2 + $0x30] sm:$0xff]
        %v994 = vld [vmem:[#allocation2 + $0x38] sm:$0xff]
        %v999 = vunpack.c.l.b16 %v983
        %v1000 = vunpack.c.l.b16 %v984
        %v1001 = vunpack.c.l.b16 %v985
        %v1002 = vunpack.c.l.b16 %v986
        %v1003 = vpack.c.b16 %v1000, %v999
        %v1004 = vpack.c.b16 %v1002, %v1001
        %1007 = vmatprep.subr.bf16.mxu0 0
        %1008 = vmatpush1.bf16.msra.mxu0 %v987
        %1009 = vmatprep.subr.bf16.mxu0 0
        %1010 = vmatpush1.bf16.msra.mxu0 %v988
        %1011 = vmatprep.subr.bf16.mxu0 0
        %1012 = vmatpush1.bf16.msra.mxu0 %v989
        %1013 = vmatprep.subr.bf16.mxu0 0
        %1014 = vmatpush1.bf16.msra.mxu0 %v990
        %1015 = vmatprep.subr.bf16.mxu0 0
        %1016 = vmatpush1.bf16.msra.mxu0 %v991
        %1017 = vmatprep.subr.bf16.mxu0 0
        %1018 = vmatpush1.bf16.msra.mxu0 %v992
        %1019 = vmatprep.subr.bf16.mxu0 0
        %1020 = vmatpush1.bf16.msra.mxu0 %v993
        %1021 = vmatprep.subr.bf16.mxu0 0
        %1022 = vmatpush1.bf16.msra.mxu0 %v994
        %1023 = vmatprep.subr.bf16.mxu0 0
        %1024 = vmatpush1.bf16.msra.mxu0 0
        %1025 = vmatprep.subr.bf16.mxu0 0
        %1026 = vmatpush1.bf16.msra.mxu0 0
        %1027 = vmatprep.subr.bf16.mxu0 0
        %1028 = vmatpush1.bf16.msra.mxu0 0
        %1029 = vmatprep.subr.bf16.mxu0 0
        %1030 = vmatpush1.bf16.msra.mxu0 0
        %1031 = vmatprep.subr.bf16.mxu0 0
        %1032 = vmatpush1.bf16.msra.mxu0 0
        %1033 = vmatprep.subr.bf16.mxu0 0
        %1034 = vmatpush1.bf16.msra.mxu0 0
        %1035 = vmatprep.subr.bf16.mxu0 0
        %1036 = vmatpush1.bf16.msra.mxu0 0
        %1037 = vmatprep.subr.bf16.mxu0 0
        %1038 = vmatpush1.bf16.msra.mxu0 0
        %1039 = vmatprep.mubr.bf16.mxu0 0
        %1040 = vmatmul.mubr.bf16.gmra.mrb[0].mxu0 %v1003
        %v1041 = vpop.f32.mrb[0].mxu0
        %v1042 = vadd.f32 0.0, %v1041
        %v1043 = vpop.f32.mrb[0].mxu0
        %v1044 = vpop.f32.mrb[0].mxu0
        %v1045 = vadd.f32 0.0, %v1044
        %v1046 = vpop.f32.mrb[0].mxu0
        %1047 = vmatprep.mubr.bf16.mxu0 0
        %1048 = vmatmul.mubr.bf16.gmra.mrb[0].mxu0 %v1004
        %v1049 = vpop.f32.mrb[0].mxu0
        %v1050 = vadd.f32 0.0, %v1049
        %v1051 = vpop.f32.mrb[0].mxu0
        %v1052 = vpop.f32.mrb[0].mxu0
        %v1053 = vadd.f32 0.0, %v1052
        %v1054 = vpop.f32.mrb[0].mxu0
        %1055 = vdwg.mxu0
        %v1056 = vmax.f32 %v1042, 0.0
        %v1057 = vmax.f32 %v1045, 0.0
        %v1058 = vmax.f32 %v1050, 0.0
        %v1059 = vmax.f32 %v1053, 0.0
        %1060 = vrot.lane.b32.xlu0 %v733, 18
        %v1061 = vpop.permute.xlu0 %1060
        %1062 = vrot.lane.b32.xlu0 %v734, 18
        %v1063 = vpop.permute.xlu0 %1062
        %1064 = vrot.lane.b32.xlu0 %v735, 18
        %v1065 = vpop.permute.xlu0 %1064
        %1066 = vrot.lane.b32.xlu0 %v736, 18
        %v1067 = vpop.permute.xlu0 %1066
        %v1068 = vld [vmem:[%s0 + $0x1] sm:$0x1]
        %v1069 = vlaneseq
        %v1070 = vshrl.u32 %v1069, 7
        %v1071 = vsub.s32 0, %v1070
        %v1072 = vrot.slane %v1068, %v1071
        %v1073 = vmul.f32 %v1061, %v1072
        %v1074 = vmul.f32 %v1063, %v1072
        %v1075 = vmul.f32 %v1065, %v1072
        %v1076 = vmul.f32 %v1067, %v1072
        %v1077 = vpack.c.bf16 %v1074, %v1073
        %v1078 = vpack.c.bf16 %v1076, %v1075
        %1079 = vst [vmem:[#allocation2] sm:$0xff] %v1077
        %1080 = vst [vmem:[#allocation2 + $0x8] sm:$0xff] %v1078
        %1081 = vst [vmem:[#allocation2 + $0x10] sm:$0xff] %v737
        %1082 = vst [vmem:[#allocation2 + $0x18] sm:$0xff] %v738
        %1083 = vrot.lane.b32.xlu0 %v733, 110
        %v1084 = vpop.permute.xlu0 %1083
        %1085 = vrot.lane.b32.xlu0 %v734, 110
        %v1086 = vpop.permute.xlu0 %1085
        %1087 = vrot.lane.b32.xlu0 %v735, 110
        %v1088 = vpop.permute.xlu0 %1087
        %1089 = vrot.lane.b32.xlu0 %v736, 110
        %v1090 = vpop.permute.xlu0 %1089
        %v1091 = vld [vmem:[%s0 + $0x8] sm:$0x1]
        %v1092 = vlaneseq
        %v1093 = vshrl.u32 %v1092, 7
        %v1094 = vsub.s32 0, %v1093
        %v1095 = vrot.slane %v1091, %v1094
        %v1096 = vmul.f32 %v1084, %v1095
        %v1097 = vmul.f32 %v1086, %v1095
        %v1098 = vmul.f32 %v1088, %v1095
        %v1099 = vmul.f32 %v1090, %v1095
        %v1100 = vpack.c.bf16 %v1097, %v1096
        %v1101 = vpack.c.bf16 %v1099, %v1098
        %1102 = vst [vmem:[#allocation2 + $0x20] sm:$0xff] %v1100
        %1103 = vst [vmem:[#allocation2 + $0x28] sm:$0xff] %v1101
        %v1104 = vld [vmem:[#allocation3 + $0x1c] sm:$0xf]
        %v1105 = vld [vmem:[#allocation3 + $0x54] sm:$0xf]
        %v1106 = vld [vmem:[#allocation3 + $0x8c] sm:$0xf]
        %v1107 = vld [vmem:[#allocation3 + $0xc4] sm:$0xf]
        %v1108 = vld [vmem:[#allocation2] sm:$0xff]
        %v1109 = vld [vmem:[#allocation2 + $0x8] sm:$0xff]
        %v1110 = vld [vmem:[#allocation2 + $0x10] sm:$0xff]
        %v1111 = vld [vmem:[#allocation2 + $0x18] sm:$0xff]
        %v1112 = vld [vmem:[#allocation2 + $0x20] sm:$0xff]
        %v1113 = vld [vmem:[#allocation2 + $0x28] sm:$0xff]
        %v1114 = vld [vmem:[#allocation2 + $0x30] sm:$0xff]
        %v1115 = vld [vmem:[#allocation2 + $0x38] sm:$0xff]
        %v1120 = vunpack.c.l.b16 %v1104
        %v1121 = vunpack.c.l.b16 %v1105
        %v1122 = vunpack.c.l.b16 %v1106
        %v1123 = vunpack.c.l.b16 %v1107
        %v1124 = vpack.c.b16 %v1121, %v1120
        %v1125 = vpack.c.b16 %v1123, %v1122
        %1128 = vmatprep.subr.bf16.mxu0 0
        %1129 = vmatpush1.bf16.msra.mxu0 %v1108
        %1130 = vmatprep.subr.bf16.mxu0 0
        %1131 = vmatpush1.bf16.msra.mxu0 %v1109
        %1132 = vmatprep.subr.bf16.mxu0 0
        %1133 = vmatpush1.bf16.msra.mxu0 %v1110
        %1134 = vmatprep.subr.bf16.mxu0 0
        %1135 = vmatpush1.bf16.msra.mxu0 %v1111
        %1136 = vmatprep.subr.bf16.mxu0 0
        %1137 = vmatpush1.bf16.msra.mxu0 %v1112
        %1138 = vmatprep.subr.bf16.mxu0 0
        %1139 = vmatpush1.bf16.msra.mxu0 %v1113
        %1140 = vmatprep.subr.bf16.mxu0 0
        %1141 = vmatpush1.bf16.msra.mxu0 %v1114
        %1142 = vmatprep.subr.bf16.mxu0 0
        %1143 = vmatpush1.bf16.msra.mxu0 %v1115
        %1144 = vmatprep.subr.bf16.mxu0 0
        %1145 = vmatpush1.bf16.msra.mxu0 0
        %1146 = vmatprep.subr.bf16.mxu0 0
        %1147 = vmatpush1.bf16.msra.mxu0 0
        %1148 = vmatprep.subr.bf16.mxu0 0
        %1149 = vmatpush1.bf16.msra.mxu0 0
        %1150 = vmatprep.subr.bf16.mxu0 0
        %1151 = vmatpush1.bf16.msra.mxu0 0
        %1152 = vmatprep.subr.bf16.mxu0 0
        %1153 = vmatpush1.bf16.msra.mxu0 0
        %1154 = vmatprep.subr.bf16.mxu0 0
        %1155 = vmatpush1.bf16.msra.mxu0 0
        %1156 = vmatprep.subr.bf16.mxu0 0
        %1157 = vmatpush1.bf16.msra.mxu0 0
        %1158 = vmatprep.subr.bf16.mxu0 0
        %1159 = vmatpush1.bf16.msra.mxu0 0
        %1160 = vmatprep.mubr.bf16.mxu0 0
        %1161 = vmatmul.mubr.bf16.gmra.mrb[0].mxu0 %v1124
        %v1162 = vpop.f32.mrb[0].mxu0
        %v1163 = vadd.f32 0.0, %v1162
        %v1164 = vpop.f32.mrb[0].mxu0
        %v1165 = vpop.f32.mrb[0].mxu0
        %v1166 = vadd.f32 0.0, %v1165
        %v1167 = vpop.f32.mrb[0].mxu0
        %1168 = vmatprep.mubr.bf16.mxu0 0
        %1169 = vmatmul.mubr.bf16.gmra.mrb[0].mxu0 %v1125
        %v1170 = vpop.f32.mrb[0].mxu0
        %v1171 = vadd.f32 0.0, %v1170
        %v1172 = vpop.f32.mrb[0].mxu0
        %v1173 = vpop.f32.mrb[0].mxu0
        %v1174 = vadd.f32 0.0, %v1173
        %v1175 = vpop.f32.mrb[0].mxu0
        %1176 = vdwg.mxu0
        %v1177 = vmax.f32 %v1163, 0.0
        %v1178 = vmax.f32 %v1166, 0.0
        %v1179 = vmax.f32 %v1171, 0.0
        %v1180 = vmax.f32 %v1174, 0.0
        %1181 = vrot.lane.b32.xlu0 %v733, 24
        %v1182 = vpop.permute.xlu0 %1181
        %1183 = vrot.lane.b32.xlu0 %v734, 24
        %v1184 = vpop.permute.xlu0 %1183
        %1185 = vrot.lane.b32.xlu0 %v735, 24
        %v1186 = vpop.permute.xlu0 %1185
        %1187 = vrot.lane.b32.xlu0 %v736, 24
        %v1188 = vpop.permute.xlu0 %1187
        %v1189 = vld [vmem:[%s0] sm:$0x1]
        %v1190 = vlaneseq
        %v1191 = vshrl.u32 %v1190, 7
        %v1192 = vsub.s32 0, %v1191
        %v1193 = vrot.slane %v1189, %v1192
        %v1194 = vmul.f32 %v1182, %v1193
        %v1195 = vmul.f32 %v1184, %v1193
        %v1196 = vmul.f32 %v1186, %v1193
        %v1197 = vmul.f32 %v1188, %v1193
        %v1198 = vpack.c.bf16 %v1195, %v1194
        %v1199 = vpack.c.bf16 %v1197, %v1196
        %1200 = vst [vmem:[#allocation2] sm:$0xff] %v1198
        %1201 = vst [vmem:[#allocation2 + $0x8] sm:$0xff] %v1199
        %1202 = vst [vmem:[#allocation2 + $0x10] sm:$0xff] %v737
        %1203 = vst [vmem:[#allocation2 + $0x18] sm:$0xff] %v738
        %1204 = vrot.lane.b32.xlu0 %v733, 104
        %v1205 = vpop.permute.xlu0 %1204
        %1206 = vrot.lane.b32.xlu0 %v734, 104
        %v1207 = vpop.permute.xlu0 %1206
        %1208 = vrot.lane.b32.xlu0 %v735, 104
        %v1209 = vpop.permute.xlu0 %1208
        %1210 = vrot.lane.b32.xlu0 %v736, 104
        %v1211 = vpop.permute.xlu0 %1210
        %v1212 = vld [vmem:[%s0 + $0x9] sm:$0x1]
        %v1213 = vlaneseq
        %v1214 = vshrl.u32 %v1213, 7
        %v1215 = vsub.s32 0, %v1214
        %v1216 = vrot.slane %v1212, %v1215
        %v1217 = vmul.f32 %v1205, %v1216
        %v1218 = vmul.f32 %v1207, %v1216
        %v1219 = vmul.f32 %v1209, %v1216
        %v1220 = vmul.f32 %v1211, %v1216
        %v1221 = vpack.c.bf16 %v1218, %v1217
        %v1222 = vpack.c.bf16 %v1220, %v1219
        %1223 = vst [vmem:[#allocation2 + $0x20] sm:$0xff] %v1221
        %1224 = vst [vmem:[#allocation2 + $0x28] sm:$0xff] %v1222
        %v1225 = vld [vmem:[#allocation3 + $0x20] sm:$0xf]
        %v1226 = vld [vmem:[#allocation3 + $0x58] sm:$0xf]
        %v1227 = vld [vmem:[#allocation3 + $0x90] sm:$0xf]
        %v1228 = vld [vmem:[#allocation3 + $0xc8] sm:$0xf]
        %v1229 = vld [vmem:[#allocation2] sm:$0xff]
        %v1230 = vld [vmem:[#allocation2 + $0x8] sm:$0xff]
        %v1231 = vld [vmem:[#allocation2 + $0x10] sm:$0xff]
        %v1232 = vld [vmem:[#allocation2 + $0x18] sm:$0xff]
        %v1233 = vld [vmem:[#allocation2 + $0x20] sm:$0xff]
        %v1234 = vld [vmem:[#allocation2 + $0x28] sm:$0xff]
        %v1235 = vld [vmem:[#allocation2 + $0x30] sm:$0xff]
        %v1236 = vld [vmem:[#allocation2 + $0x38] sm:$0xff]
        %v1241 = vunpack.c.l.b16 %v1225
        %v1242 = vunpack.c.l.b16 %v1226
        %v1243 = vunpack.c.l.b16 %v1227
        %v1244 = vunpack.c.l.b16 %v1228
        %v1245 = vpack.c.b16 %v1242, %v1241
        %v1246 = vpack.c.b16 %v1244, %v1243
        %1249 = vmatprep.subr.bf16.mxu0 0
        %1250 = vmatpush1.bf16.msra.mxu0 %v1229
        %1251 = vmatprep.subr.bf16.mxu0 0
        %1252 = vmatpush1.bf16.msra.mxu0 %v1230
        %1253 = vmatprep.subr.bf16.mxu0 0
        %1254 = vmatpush1.bf16.msra.mxu0 %v1231
        %1255 = vmatprep.subr.bf16.mxu0 0
        %1256 = vmatpush1.bf16.msra.mxu0 %v1232
        %1257 = vmatprep.subr.bf16.mxu0 0
        %1258 = vmatpush1.bf16.msra.mxu0 %v1233
        %1259 = vmatprep.subr.bf16.mxu0 0
        %1260 = vmatpush1.bf16.msra.mxu0 %v1234
        %1261 = vmatprep.subr.bf16.mxu0 0
        %1262 = vmatpush1.bf16.msra.mxu0 %v1235
        %1263 = vmatprep.subr.bf16.mxu0 0
        %1264 = vmatpush1.bf16.msra.mxu0 %v1236
        %1265 = vmatprep.subr.bf16.mxu0 0
        %1266 = vmatpush1.bf16.msra.mxu0 0
        %1267 = vmatprep.subr.bf16.mxu0 0
        %1268 = vmatpush1.bf16.msra.mxu0 0
        %1269 = vmatprep.subr.bf16.mxu0 0
        %1270 = vmatpush1.bf16.msra.mxu0 0
        %1271 = vmatprep.subr.bf16.mxu0 0
        %1272 = vmatpush1.bf16.msra.mxu0 0
        %1273 = vmatprep.subr.bf16.mxu0 0
        %1274 = vmatpush1.bf16.msra.mxu0 0
        %1275 = vmatprep.subr.bf16.mxu0 0
        %1276 = vmatpush1.bf16.msra.mxu0 0
        %1277 = vmatprep.subr.bf16.mxu0 0
        %1278 = vmatpush1.bf16.msra.mxu0 0
        %1279 = vmatprep.subr.bf16.mxu0 0
        %1280 = vmatpush1.bf16.msra.mxu0 0
        %1281 = vmatprep.mubr.bf16.mxu0 0
        %1282 = vmatmul.mubr.bf16.gmra.mrb[0].mxu0 %v1245
        %v1283 = vpop.f32.mrb[0].mxu0
        %v1284 = vadd.f32 0.0, %v1283
        %v1285 = vpop.f32.mrb[0].mxu0
        %v1286 = vpop.f32.mrb[0].mxu0
        %v1287 = vadd.f32 0.0, %v1286
        %v1288 = vpop.f32.mrb[0].mxu0
        %1289 = vmatprep.mubr.bf16.mxu0 0
        %1290 = vmatmul.mubr.bf16.gmra.mrb[0].mxu0 %v1246
        %v1291 = vpop.f32.mrb[0].mxu0
        %v1292 = vadd.f32 0.0, %v1291
        %v1293 = vpop.f32.mrb[0].mxu0
        %v1294 = vpop.f32.mrb[0].mxu0
        %v1295 = vadd.f32 0.0, %v1294
        %v1296 = vpop.f32.mrb[0].mxu0
        %1297 = vdwg.mxu0
        %v1298 = vmax.f32 %v1284, 0.0
        %v1299 = vmax.f32 %v1287, 0.0
        %v1300 = vmax.f32 %v1292, 0.0
        %v1301 = vmax.f32 %v1295, 0.0
        %v1302 = vld [vmem:[%s1] sm:$0xf]
        %v1303 = vld [vmem:[%s2] sm:$0xf]
        %v1304 = vld [vmem:[%s2 + $0x4] sm:$0xf]
        %v1305 = vld [vmem:[%s2 + $0x8] sm:$0xf]
        %v1306 = vld [vmem:[%s2 + $0xc] sm:$0xf]
        %v1307 = vld [vmem:[%s2 + $0x10] sm:$0xf]
        %v1308 = vld [vmem:[%s2 + $0x14] sm:$0xf]
        %v1309 = vld [vmem:[%s2 + $0x18] sm:$0xf]
        %v1310 = vld [vmem:[%s2 + $0x1c] sm:$0xf]
        %v1311 = vld [vmem:[%s2 + $0x20] sm:$0xf]
        %v1312 = vld [vmem:[%s2 + $0x24] sm:$0xf]
        %v1313 = vld [vmem:[%s2 + $0x28] sm:$0xf]
        %v1314 = vld [vmem:[%s2 + $0x2c] sm:$0xf]
        %v1315 = vld [vmem:[%s2 + $0x30] sm:$0xf]
        %v1316 = vld [vmem:[%s2 + $0x34] sm:$0xf]
        %v1317 = vld [vmem:[%s2 + $0x38] sm:$0xf]
        %v1318 = vld [vmem:[%s2 + $0x3c] sm:$0xf]
        %v1335 = vunpack.c.l.b16 %v1303
        %v1336 = vunpack.c.l.b16 %v1304
        %v1337 = vunpack.c.l.b16 %v1305
        %v1338 = vunpack.c.l.b16 %v1306
        %v1339 = vunpack.c.l.b16 %v1307
        %v1340 = vunpack.c.l.b16 %v1308
        %v1341 = vunpack.c.l.b16 %v1309
        %v1342 = vunpack.c.l.b16 %v1310
        %v1343 = vunpack.c.l.b16 %v1311
        %v1344 = vunpack.c.l.b16 %v1312
        %v1345 = vunpack.c.l.b16 %v1313
        %v1346 = vunpack.c.l.b16 %v1314
        %v1347 = vunpack.c.l.b16 %v1315
        %v1348 = vunpack.c.l.b16 %v1316
        %v1349 = vunpack.c.l.b16 %v1317
        %v1350 = vunpack.c.l.b16 %v1318
        %v1351 = vpack.c.b16 %v1336, %v1335
        %v1352 = vpack.c.b16 %v1338, %v1337
        %v1353 = vpack.c.b16 %v1340, %v1339
        %v1354 = vpack.c.b16 %v1342, %v1341
        %v1355 = vpack.c.b16 %v1344, %v1343
        %v1356 = vpack.c.b16 %v1346, %v1345
        %v1357 = vpack.c.b16 %v1348, %v1347
        %v1358 = vpack.c.b16 %v1350, %v1349
        %1367 = vmatprep.subr.bf16.mxu0 0
        %1368 = vmatpush1.bf16.msra.mxu0 %v1351
        %1369 = vmatprep.subr.bf16.mxu0 0
        %1370 = vmatpush1.bf16.msra.mxu0 %v1352
        %1371 = vmatprep.subr.bf16.mxu0 0
        %1372 = vmatpush1.bf16.msra.mxu0 %v1353
        %1373 = vmatprep.subr.bf16.mxu0 0
        %1374 = vmatpush1.bf16.msra.mxu0 %v1354
        %1375 = vmatprep.subr.bf16.mxu0 0
        %1376 = vmatpush1.bf16.msra.mxu0 %v1355
        %1377 = vmatprep.subr.bf16.mxu0 0
        %1378 = vmatpush1.bf16.msra.mxu0 %v1356
        %1379 = vmatprep.subr.bf16.mxu0 0
        %1380 = vmatpush1.bf16.msra.mxu0 %v1357
        %1381 = vmatprep.subr.bf16.mxu0 0
        %1382 = vmatpush1.bf16.msra.mxu0 %v1358
        %1383 = vmatprep.subr.bf16.mxu0 0
        %1384 = vmatpush1.bf16.msra.mxu0 0
        %1385 = vmatprep.subr.bf16.mxu0 0
        %1386 = vmatpush1.bf16.msra.mxu0 0
        %1387 = vmatprep.subr.bf16.mxu0 0
        %1388 = vmatpush1.bf16.msra.mxu0 0
        %1389 = vmatprep.subr.bf16.mxu0 0
        %1390 = vmatpush1.bf16.msra.mxu0 0
        %1391 = vmatprep.subr.bf16.mxu0 0
        %1392 = vmatpush1.bf16.msra.mxu0 0
        %1393 = vmatprep.subr.bf16.mxu0 0
        %1394 = vmatpush1.bf16.msra.mxu0 0
        %1395 = vmatprep.subr.bf16.mxu0 0
        %1396 = vmatpush1.bf16.msra.mxu0 0
        %1397 = vmatprep.subr.bf16.mxu0 0
        %1398 = vmatpush1.bf16.msra.mxu0 0
        %1399 = vmatprep.mubr.bf16.mxu0 0
        %1400 = vmatmul.mubr.bf16.gmra.mrb[0].mxu0 %v737
        %v1401 = vpop.f32.mrb[0].mxu0
        %v1402 = vadd.f32 0.0, %v1401
        %v1403 = vpop.f32.mrb[0].mxu0
        %v1404 = vpop.f32.mrb[0].mxu0
        %v1405 = vadd.f32 0.0, %v1404
        %v1406 = vpop.f32.mrb[0].mxu0
        %1407 = vmatprep.mubr.bf16.mxu0 0
        %1408 = vmatmul.mubr.bf16.gmra.mrb[0].mxu0 %v738
        %v1409 = vpop.f32.mrb[0].mxu0
        %v1410 = vadd.f32 0.0, %v1409
        %v1411 = vpop.f32.mrb[0].mxu0
        %v1412 = vpop.f32.mrb[0].mxu0
        %v1413 = vadd.f32 0.0, %v1412
        %v1414 = vpop.f32.mrb[0].mxu0
        %1415 = vdwg.mxu0
        %v1416 = vmul.f32 %v1402, 0.0078125
        %v1417 = vmul.f32 %v1405, 0.0078125
        %v1418 = vmul.f32 %v1410, 0.0078125
        %v1419 = vmul.f32 %v1413, 0.0078125
        %v1420 = vld [vmem:[#allocation3 + $0x24] sm:$0xf]
        %v1421 = vld [vmem:[#allocation3 + $0x5c] sm:$0xf]
        %v1422 = vld [vmem:[#allocation3 + $0x94] sm:$0xf]
        %v1423 = vld [vmem:[#allocation3 + $0xcc] sm:$0xf]
        %v1424 = vunpack.c.l.bf16 %v1420
        %v1425 = vunpack.c.l.bf16 %v1421
        %v1426 = vunpack.c.l.bf16 %v1422
        %v1427 = vunpack.c.l.bf16 %v1423
        %v1428 = vpack.c.bf16 %v1417, %v1416
        %v1429 = vpack.c.bf16 %v1419, %v1418
        %1431 = vset.pattern.permute.xlu0 127
        %1432 = vperm.xlu0 %1431, %v1424
        %v1433 = vpop.permute.xlu0 %1432
        %1436 = vset.pattern.permute.xlu0 127
        %1437 = vperm.xlu0 %1436, %v1425
        %v1438 = vpop.permute.xlu0 %1437
        %1441 = vset.pattern.permute.xlu0 127
        %1442 = vperm.xlu0 %1441, %v1426
        %v1443 = vpop.permute.xlu0 %1442
        %1446 = vset.pattern.permute.xlu0 127
        %1447 = vperm.xlu0 %1446, %v1427
        %v1448 = vpop.permute.xlu0 %1447
        %v1454 = vunpack.c.l.b16 %v1420
        %v1455 = vunpack.c.l.b16 %v1421
        %v1456 = vunpack.c.l.b16 %v1422
        %v1457 = vunpack.c.l.b16 %v1423
        %v1458 = vpack.c.b16 %v1455, %v1454
        %v1459 = vpack.c.b16 %v1457, %v1456
        %vm1460 = vcmask 261120
        %v1462 = vsel %vm1460, %v1458, 0
        %v1465 = vsel %vm1460, %v1459, 0
        %1467 = vmatprep.subr.bf16.mxu0 0
        %1468 = vmatpush1.bf16.msra.mxu0 %v1428
        %1469 = vmatprep.subr.bf16.mxu0 0
        %1470 = vmatpush1.bf16.msra.mxu0 %v1429
        %1471 = vmatprep.subr.bf16.mxu0 0
        %1472 = vmatpush1.bf16.msra.mxu0 0
        %1473 = vmatprep.subr.bf16.mxu0 0
        %1474 = vmatpush1.bf16.msra.mxu0 0
        %1475 = vmatprep.subr.bf16.mxu0 0
        %1476 = vmatpush1.bf16.msra.mxu0 0
        %1477 = vmatprep.subr.bf16.mxu0 0
        %1478 = vmatpush1.bf16.msra.mxu0 0
        %1479 = vmatprep.subr.bf16.mxu0 0
        %1480 = vmatpush1.bf16.msra.mxu0 0
        %1481 = vmatprep.subr.bf16.mxu0 0
        %1482 = vmatpush1.bf16.msra.mxu0 0
        %1483 = vmatprep.subr.bf16.mxu0 0
        %1484 = vmatpush1.bf16.msra.mxu0 0
        %1485 = vmatprep.subr.bf16.mxu0 0
        %1486 = vmatpush1.bf16.msra.mxu0 0
        %1487 = vmatprep.subr.bf16.mxu0 0
        %1488 = vmatpush1.bf16.msra.mxu0 0
        %1489 = vmatprep.subr.bf16.mxu0 0
        %1490 = vmatpush1.bf16.msra.mxu0 0
        %1491 = vmatprep.subr.bf16.mxu0 0
        %1492 = vmatpush1.bf16.msra.mxu0 0
        %1493 = vmatprep.subr.bf16.mxu0 0
        %1494 = vmatpush1.bf16.msra.mxu0 0
        %1495 = vmatprep.subr.bf16.mxu0 0
        %1496 = vmatpush1.bf16.msra.mxu0 0
        %1497 = vmatprep.subr.bf16.mxu0 0
        %1498 = vmatpush1.bf16.msra.mxu0 0
        %1499 = vmatprep.mubr.bf16.mxu0 0
        %1500 = vmatmul.mubr.bf16.gmra.mrb[0].mxu0 %v1462
        %v1501 = vpop.f32.mrb[0].mxu0
        %v1502 = vadd.f32 %v1433, %v1501
        %v1503 = vpop.f32.mrb[0].mxu0
        %v1504 = vpop.f32.mrb[0].mxu0
        %v1505 = vadd.f32 %v1438, %v1504
        %v1506 = vpop.f32.mrb[0].mxu0
        %1507 = vmatprep.mubr.bf16.mxu0 0
        %1508 = vmatmul.mubr.bf16.gmra.mrb[0].mxu0 %v1465
        %v1509 = vpop.f32.mrb[0].mxu0
        %v1510 = vadd.f32 %v1443, %v1509
        %v1511 = vpop.f32.mrb[0].mxu0
        %v1512 = vpop.f32.mrb[0].mxu0
        %v1513 = vadd.f32 %v1448, %v1512
        %v1514 = vpop.f32.mrb[0].mxu0
        %1515 = vdwg.mxu0
        %v1516 = vmax.f32 %v1502, 0.0
        %v1517 = vmax.f32 %v1505, 0.0
        %v1518 = vmax.f32 %v1510, 0.0
        %v1519 = vmax.f32 %v1513, 0.0
        %v1520 = vpack.c.bf16 %v1517, %v1516
        %v1521 = vpack.c.bf16 %v1519, %v1518
        %vm1522 = vcmask 64512
        %v1524 = vsel %vm1522, %v1520, 0
        %v1527 = vsel %vm1522, %v1521, 0
        %vm1529 = vcmask 1043456
        %v1531 = vsel %vm1529, %v1302, 0
        %1533 = vmatprep.subr.bf16.mxu0 0
        %1534 = vmatpush1.bf16.msra.mxu0 %v1531
        %1535 = vmatprep.subr.bf16.mxu0 0
        %1536 = vmatpush1.bf16.msra.mxu0 0
        %1537 = vmatprep.subr.bf16.mxu0 0
        %1538 = vmatpush1.bf16.msra.mxu0 0
        %1539 = vmatprep.subr.bf16.mxu0 0
        %1540 = vmatpush1.bf16.msra.mxu0 0
        %1541 = vmatprep.subr.bf16.mxu0 0
        %1542 = vmatpush1.bf16.msra.mxu0 0
        %1543 = vmatprep.subr.bf16.mxu0 0
        %1544 = vmatpush1.bf16.msra.mxu0 0
        %1545 = vmatprep.subr.bf16.mxu0 0
        %1546 = vmatpush1.bf16.msra.mxu0 0
        %1547 = vmatprep.subr.bf16.mxu0 0
        %1548 = vmatpush1.bf16.msra.mxu0 0
        %1549 = vmatprep.subr.bf16.mxu0 0
        %1550 = vmatpush1.bf16.msra.mxu0 0
        %1551 = vmatprep.subr.bf16.mxu0 0
        %1552 = vmatpush1.bf16.msra.mxu0 0
        %1553 = vmatprep.subr.bf16.mxu0 0
        %1554 = vmatpush1.bf16.msra.mxu0 0
        %1555 = vmatprep.subr.bf16.mxu0 0
        %1556 = vmatpush1.bf16.msra.mxu0 0
        %1557 = vmatprep.subr.bf16.mxu0 0
        %1558 = vmatpush1.bf16.msra.mxu0 0
        %1559 = vmatprep.subr.bf16.mxu0 0
        %1560 = vmatpush1.bf16.msra.mxu0 0
        %1561 = vmatprep.subr.bf16.mxu0 0
        %1562 = vmatpush1.bf16.msra.mxu0 0
        %1563 = vmatprep.subr.bf16.mxu0 0
        %1564 = vmatpush1.bf16.msra.mxu0 0
        %1565 = vmatprep.mubr.bf16.mxu0 0
        %1566 = vmatmul.mubr.bf16.gmra.mrb[0].mxu0 %v1524
        %v1567 = vpop.f32.mrb[0].mxu0
        %v1568 = vadd.f32 0.0, %v1567
        %v1569 = vpop.f32.mrb[0].mxu0
        %v1570 = vpop.f32.mrb[0].mxu0
        %v1571 = vadd.f32 0.0, %v1570
        %v1572 = vpop.f32.mrb[0].mxu0
        %1573 = vmatprep.mubr.bf16.mxu0 0
        %1574 = vmatmul.mubr.bf16.gmra.mrb[0].mxu0 %v1527
        %v1575 = vpop.f32.mrb[0].mxu0
        %v1576 = vadd.f32 0.0, %v1575
        %v1577 = vpop.f32.mrb[0].mxu0
        %v1578 = vpop.f32.mrb[0].mxu0
        %v1579 = vadd.f32 0.0, %v1578
        %v1580 = vpop.f32.mrb[0].mxu0
        %1581 = vdwg.mxu0
        %v1582 = vpack.c.bf16 %v815, %v814
        %v1583 = vpack.c.bf16 %v817, %v816
        %1584 = vst [vmem:[#allocation2] sm:$0xff] %v1582
        %1585 = vst [vmem:[#allocation2 + $0x8] sm:$0xff] %v1583
        %v1586 = vpack.c.bf16 %v936, %v935
        %v1587 = vpack.c.bf16 %v938, %v937
        %1588 = vst [vmem:[#allocation2 + $0x10] sm:$0xff] %v1586
        %1589 = vst [vmem:[#allocation2 + $0x18] sm:$0xff] %v1587
        %v1590 = vpack.c.bf16 %v1057, %v1056
        %v1591 = vpack.c.bf16 %v1059, %v1058
        %1592 = vst [vmem:[#allocation2 + $0x20] sm:$0xff] %v1590
        %1593 = vst [vmem:[#allocation2 + $0x28] sm:$0xff] %v1591
        %v1594 = vpack.c.bf16 %v1178, %v1177
        %v1595 = vpack.c.bf16 %v1180, %v1179
        %1596 = vst [vmem:[#allocation2 + $0x30] sm:$0xff] %v1594
        %1597 = vst [vmem:[#allocation2 + $0x38] sm:$0xff] %v1595
        %v1598 = vpack.c.bf16 %v1299, %v1298
        %v1599 = vpack.c.bf16 %v1301, %v1300
        %1600 = vst [vmem:[#allocation2 + $0x40] sm:$0xff] %v1598
        %1601 = vst [vmem:[#allocation2 + $0x48] sm:$0xff] %v1599
        %v1602 = vpack.c.bf16 %v1571, %v1568
        %v1603 = vpack.c.bf16 %v1579, %v1576
        %1604 = vst [vmem:[#allocation2 + $0x50] sm:$0xff] %v1602
        %1605 = vst [vmem:[#allocation2 + $0x58] sm:$0xff] %v1603
        %v1606 = vld [vmem:[#allocation3 + $0x28] sm:$0xff]
        %v1607 = vld [vmem:[#allocation3 + $0x60] sm:$0xff]
        %v1608 = vld [vmem:[#allocation3 + $0x98] sm:$0xff]
        %v1609 = vld [vmem:[#allocation3 + $0xd0] sm:$0xff]
        %v1610 = vld [vmem:[#allocation2] sm:$0xff]
        %v1611 = vld [vmem:[#allocation2 + $0x8] sm:$0xff]
        %v1612 = vld [vmem:[#allocation2 + $0x10] sm:$0xff]
        %v1613 = vld [vmem:[#allocation2 + $0x18] sm:$0xff]
        %v1614 = vld [vmem:[#allocation2 + $0x20] sm:$0xff]
        %v1615 = vld [vmem:[#allocation2 + $0x28] sm:$0xff]
        %v1616 = vld [vmem:[#allocation2 + $0x30] sm:$0xff]
        %v1617 = vld [vmem:[#allocation2 + $0x38] sm:$0xff]
        %v1618 = vld [vmem:[#allocation2 + $0x40] sm:$0xff]
        %v1619 = vld [vmem:[#allocation2 + $0x48] sm:$0xff]
        %v1620 = vld [vmem:[#allocation2 + $0x50] sm:$0xff]
        %v1621 = vld [vmem:[#allocation2 + $0x58] sm:$0xff]
        %v1622 = vld [vmem:[#allocation2 + $0x60] sm:$0xff]
        %v1623 = vld [vmem:[#allocation2 + $0x68] sm:$0xff]
        %v1624 = vld [vmem:[#allocation2 + $0x70] sm:$0xff]
        %v1625 = vld [vmem:[#allocation2 + $0x78] sm:$0xff]
        %v1630 = vunpack.c.l.b16 %v1606
        %v1631 = vunpack.c.h.b16 %v1606
        %v1632 = vunpack.c.l.b16 %v1607
        %v1633 = vunpack.c.h.b16 %v1607
        %v1634 = vunpack.c.l.b16 %v1608
        %v1635 = vunpack.c.h.b16 %v1608
        %v1636 = vunpack.c.l.b16 %v1609
        %v1637 = vunpack.c.h.b16 %v1609
        %v1638 = vpack.c.b16 %v1632, %v1630
        %v1639 = vpack.c.b16 %v1633, %v1631
        %v1640 = vpack.c.b16 %v1636, %v1634
        %v1641 = vpack.c.b16 %v1637, %v1635
        %1646 = vmatprep.subr.bf16.mxu0 0
        %1647 = vmatpush1.bf16.msra.mxu0 %v1610
        %1648 = vmatprep.subr.bf16.mxu0 0
        %1649 = vmatpush1.bf16.msra.mxu0 %v1611
        %1650 = vmatprep.subr.bf16.mxu0 0
        %1651 = vmatpush1.bf16.msra.mxu0 %v1612
        %1652 = vmatprep.subr.bf16.mxu0 0
        %1653 = vmatpush1.bf16.msra.mxu0 %v1613
        %1654 = vmatprep.subr.bf16.mxu0 0
        %1655 = vmatpush1.bf16.msra.mxu0 %v1614
        %1656 = vmatprep.subr.bf16.mxu0 0
        %1657 = vmatpush1.bf16.msra.mxu0 %v1615
        %1658 = vmatprep.subr.bf16.mxu0 0
        %1659 = vmatpush1.bf16.msra.mxu0 %v1616
        %1660 = vmatprep.subr.bf16.mxu0 0
        %1661 = vmatpush1.bf16.msra.mxu0 %v1617
        %1662 = vmatprep.subr.bf16.mxu0 0
        %1663 = vmatpush1.bf16.msra.mxu0 %v1618
        %1664 = vmatprep.subr.bf16.mxu0 0
        %1665 = vmatpush1.bf16.msra.mxu0 %v1619
        %1666 = vmatprep.subr.bf16.mxu0 0
        %1667 = vmatpush1.bf16.msra.mxu0 %v1620
        %1668 = vmatprep.subr.bf16.mxu0 0
        %1669 = vmatpush1.bf16.msra.mxu0 %v1621
        %1670 = vmatprep.subr.bf16.mxu0 0
        %1671 = vmatpush1.bf16.msra.mxu0 %v1622
        %1672 = vmatprep.subr.bf16.mxu0 0
        %1673 = vmatpush1.bf16.msra.mxu0 %v1623
        %1674 = vmatprep.subr.bf16.mxu0 0
        %1675 = vmatpush1.bf16.msra.mxu0 %v1624
        %1676 = vmatprep.subr.bf16.mxu0 0
        %1677 = vmatpush1.bf16.msra.mxu0 %v1625
        %1678 = vmatprep.mubr.bf16.mxu0 %v1639
        %1679 = vmatmul.mubr.bf16.gmra.mrb[0].mxu0 %v1638
        %v1680 = vpop.f32.mrb[0].mxu0
        %v1681 = vadd.f32 0.0, %v1680
        %v1682 = vpop.f32.mrb[0].mxu0
        %v1683 = vpop.f32.mrb[0].mxu0
        %v1684 = vadd.f32 0.0, %v1683
        %v1685 = vpop.f32.mrb[0].mxu0
        %1686 = vmatprep.mubr.bf16.mxu0 %v1641
        %1687 = vmatmul.mubr.bf16.gmra.mrb[0].mxu0 %v1640
        %v1688 = vpop.f32.mrb[0].mxu0
        %v1689 = vadd.f32 0.0, %v1688
        %v1690 = vpop.f32.mrb[0].mxu0
        %v1691 = vpop.f32.mrb[0].mxu0
        %v1692 = vadd.f32 0.0, %v1691
        %v1693 = vpop.f32.mrb[0].mxu0
        %1694 = vdwg.mxu0
        %v1695 = vmax.f32 %v1681, 0.0
        %v1696 = vmax.f32 %v1684, 0.0
        %v1697 = vmax.f32 %v1689, 0.0
        %v1698 = vmax.f32 %v1692, 0.0
        %v1699 = vld [vmem:[#allocation2 + $0x38] sm:$0x80]
        %v1700 = vsel %vm254, 1065369472, %v1699
        %1701 = vst [vmem:[#allocation2 + $0x38] sm:$0x80] %v1700
        %1702 = vrot.lane.b32.xlu0 %v1695, 1
        %v1703 = vpop.permute.xlu0 %1702
        %1704 = vrot.lane.b32.xlu0 %v1696, 1
        %v1705 = vpop.permute.xlu0 %1704
        %1706 = vrot.lane.b32.xlu0 %v1697, 1
        %v1707 = vpop.permute.xlu0 %1706
        %1708 = vrot.lane.b32.xlu0 %v1698, 1
        %v1709 = vpop.permute.xlu0 %1708
        %v1710 = vld [vmem:[%s0 + $0x4] sm:$0x1]
        %v1711 = vlaneseq
        %v1712 = vshrl.u32 %v1711, 7
        %v1713 = vsub.s32 0, %v1712
        %v1714 = vrot.slane %v1710, %v1713
        %v1715 = vmul.f32 %v1703, %v1714
        %v1716 = vmul.f32 %v1705, %v1714
        %v1717 = vmul.f32 %v1707, %v1714
        %v1718 = vmul.f32 %v1709, %v1714
        %v1719 = vpack.c.bf16 %v1716, %v1715
        %v1720 = vpack.c.bf16 %v1718, %v1717
        %1721 = vst [vmem:[#allocation2] sm:$0xff] %v1719
        %1722 = vst [vmem:[#allocation2 + $0x8] sm:$0xff] %v1720
        %v1723 = vpack.c.bf16 %v1696, %v1695
        %v1724 = vpack.c.bf16 %v1698, %v1697
        %1725 = vst [vmem:[#allocation2 + $0x10] sm:$0xff] %v1723
        %1726 = vst [vmem:[#allocation2 + $0x18] sm:$0xff] %v1724
        %1727 = vrot.lane.b32.xlu0 %v1695, 127
        %v1728 = vpop.permute.xlu0 %1727
        %1729 = vrot.lane.b32.xlu0 %v1696, 127
        %v1730 = vpop.permute.xlu0 %1729
        %1731 = vrot.lane.b32.xlu0 %v1697, 127
        %v1732 = vpop.permute.xlu0 %1731
        %1733 = vrot.lane.b32.xlu0 %v1698, 127
        %v1734 = vpop.permute.xlu0 %1733
        %v1735 = vld [vmem:[%s0 + $0x5] sm:$0x1]
        %v1736 = vlaneseq
        %v1737 = vshrl.u32 %v1736, 7
        %v1738 = vsub.s32 0, %v1737
        %v1739 = vrot.slane %v1735, %v1738
        %v1740 = vmul.f32 %v1728, %v1739
        %v1741 = vmul.f32 %v1730, %v1739
        %v1742 = vmul.f32 %v1732, %v1739
        %v1743 = vmul.f32 %v1734, %v1739
        %v1744 = vpack.c.bf16 %v1741, %v1740
        %v1745 = vpack.c.bf16 %v1743, %v1742
        %1746 = vst [vmem:[#allocation2 + $0x20] sm:$0xff] %v1744
        %1747 = vst [vmem:[#allocation2 + $0x28] sm:$0xff] %v1745
        %v1748 = vld [vmem:[#allocation3 + $0x30] sm:$0xf]
        %v1749 = vld [vmem:[#allocation3 + $0x68] sm:$0xf]
        %v1750 = vld [vmem:[#allocation2] sm:$0xff]
        %v1751 = vld [vmem:[#allocation2 + $0x8] sm:$0xff]
        %v1752 = vld [vmem:[#allocation2 + $0x10] sm:$0xff]
        %v1753 = vld [vmem:[#allocation2 + $0x18] sm:$0xff]
        %v1754 = vld [vmem:[#allocation2 + $0x20] sm:$0xff]
        %v1755 = vld [vmem:[#allocation2 + $0x28] sm:$0xff]
        %v1756 = vld [vmem:[#allocation2 + $0x30] sm:$0xff]
        %v1757 = vld [vmem:[#allocation2 + $0x38] sm:$0xff]
        %v1760 = vunpack.c.l.b16 %v1748
        %v1761 = vunpack.c.l.b16 %v1749
        %v1762 = vpack.c.b16 %v1761, %v1760
        %1764 = vmatprep.subr.bf16.mxu0 0
        %1765 = vmatpush1.bf16.msra.mxu0 %v1750
        %1766 = vmatprep.subr.bf16.mxu0 0
        %1767 = vmatpush1.bf16.msra.mxu0 %v1751
        %1768 = vmatprep.subr.bf16.mxu0 0
        %1769 = vmatpush1.bf16.msra.mxu0 %v1752
        %1770 = vmatprep.subr.bf16.mxu0 0
        %1771 = vmatpush1.bf16.msra.mxu0 %v1753
        %1772 = vmatprep.subr.bf16.mxu0 0
        %1773 = vmatpush1.bf16.msra.mxu0 %v1754
        %1774 = vmatprep.subr.bf16.mxu0 0
        %1775 = vmatpush1.bf16.msra.mxu0 %v1755
        %1776 = vmatprep.subr.bf16.mxu0 0
        %1777 = vmatpush1.bf16.msra.mxu0 %v1756
        %1778 = vmatprep.subr.bf16.mxu0 0
        %1779 = vmatpush1.bf16.msra.mxu0 %v1757
        %1780 = vmatprep.subr.bf16.mxu0 0
        %1781 = vmatpush1.bf16.msra.mxu0 0
        %1782 = vmatprep.subr.bf16.mxu0 0
        %1783 = vmatpush1.bf16.msra.mxu0 0
        %1784 = vmatprep.subr.bf16.mxu0 0
        %1785 = vmatpush1.bf16.msra.mxu0 0
        %1786 = vmatprep.subr.bf16.mxu0 0
        %1787 = vmatpush1.bf16.msra.mxu0 0
        %1788 = vmatprep.subr.bf16.mxu0 0
        %1789 = vmatpush1.bf16.msra.mxu0 0
        %1790 = vmatprep.subr.bf16.mxu0 0
        %1791 = vmatpush1.bf16.msra.mxu0 0
        %1792 = vmatprep.subr.bf16.mxu0 0
        %1793 = vmatpush1.bf16.msra.mxu0 0
        %1794 = vmatprep.subr.bf16.mxu0 0
        %1795 = vmatpush1.bf16.msra.mxu0 0
        %1796 = vmatprep.mubr.bf16.mxu0 0
        %1797 = vmatmul.mubr.bf16.gmra.mrb[0].mxu0 %v1762
        %v1798 = vpop.f32.mrb[0].mxu0
        %v1799 = vadd.f32 0.0, %v1798
        %v1800 = vpop.f32.mrb[0].mxu0
        %v1801 = vpop.f32.mrb[0].mxu0
        %v1802 = vadd.f32 0.0, %v1801
        %v1803 = vpop.f32.mrb[0].mxu0
        %1804 = vdwg.mxu0
        %v1805 = vmax.f32 %v1799, 0.0
        %v1806 = vmax.f32 %v1802, 0.0
        %v1807 = vpack.c.bf16 %v1806, %v1805
        %1808 = vst [vmem:[#allocation2] sm:$0xff] %v1807
        %v1809 = vld [vmem:[#allocation3 + $0x34] sm:$0xf]
        %v1810 = vld [vmem:[#allocation2] sm:$0xff]
        %v1811 = vld [vmem:[#allocation2 + $0x8] sm:$0xff]
        %v1812 = vld [vmem:[#allocation2 + $0x10] sm:$0xff]
        %v1813 = vld [vmem:[#allocation2 + $0x18] sm:$0xff]
        %v1814 = vld [vmem:[#allocation2 + $0x20] sm:$0xff]
        %v1815 = vld [vmem:[#allocation2 + $0x28] sm:$0xff]
        %v1816 = vld [vmem:[#allocation2 + $0x30] sm:$0xff]
        %v1817 = vld [vmem:[#allocation2 + $0x38] sm:$0xff]
        %1818 = vmatprep.subr.bf16.mxu0 0
        %1819 = vmatpush1.bf16.msra.mxu0 %v1810
        %1820 = vmatprep.subr.bf16.mxu0 0
        %1821 = vmatpush1.bf16.msra.mxu0 %v1811
        %1822 = vmatprep.subr.bf16.mxu0 0
        %1823 = vmatpush1.bf16.msra.mxu0 %v1812
        %1824 = vmatprep.subr.bf16.mxu0 0
        %1825 = vmatpush1.bf16.msra.mxu0 %v1813
        %1826 = vmatprep.subr.bf16.mxu0 0
        %1827 = vmatpush1.bf16.msra.mxu0 %v1814
        %1828 = vmatprep.subr.bf16.mxu0 0
        %1829 = vmatpush1.bf16.msra.mxu0 %v1815
        %1830 = vmatprep.subr.bf16.mxu0 0
        %1831 = vmatpush1.bf16.msra.mxu0 %v1816
        %1832 = vmatprep.subr.bf16.mxu0 0
        %1833 = vmatpush1.bf16.msra.mxu0 %v1817
        %1834 = vmatprep.subr.bf16.mxu0 0
        %1835 = vmatpush1.bf16.msra.mxu0 0
        %1836 = vmatprep.subr.bf16.mxu0 0
        %1837 = vmatpush1.bf16.msra.mxu0 0
        %1838 = vmatprep.subr.bf16.mxu0 0
        %1839 = vmatpush1.bf16.msra.mxu0 0
        %1840 = vmatprep.subr.bf16.mxu0 0
        %1841 = vmatpush1.bf16.msra.mxu0 0
        %1842 = vmatprep.subr.bf16.mxu0 0
        %1843 = vmatpush1.bf16.msra.mxu0 0
        %1844 = vmatprep.subr.bf16.mxu0 0
        %1845 = vmatpush1.bf16.msra.mxu0 0
        %1846 = vmatprep.subr.bf16.mxu0 0
        %1847 = vmatpush1.bf16.msra.mxu0 0
        %1848 = vmatprep.subr.bf16.mxu0 0
        %1849 = vmatpush1.bf16.msra.mxu0 0
        %1850 = vmatprep.mubr.bf16.mxu0 0
        %1851 = vmatmul.mubr.bf16.gmra.mrb[0].mxu0 %v1809
        %v1852 = vpop.f32.mrb[0].mxu0
        %v1853 = vadd.f32 0.0, %v1852
        %v1854 = vpop.f32.mrb[0].mxu0
        %v1855 = vpop.f32.mrb[0].mxu0
        %v1856 = vpop.f32.mrb[0].mxu0
        %1857 = vdwg.mxu0
        %v1858 = vmax.f32 %v1853, 0.0
        %v1859 = vxor.u32 %v1858, 2147483648
        %v1860 = vmul.f32 %v1859, 1.442695
        %v1861 = vpow.pop %v1860
        %v1862 = vadd.f32 %v1861, 1.0
        %v1863 = vrcp.pop %v1862
        %v1864 = vmul.f32 1.0, %v1863
        %1865 = vst [vmem:[%s229] sm:$0x1] %v1864
        %s1866 = sand.u32 %s138, 1
        %s1867 = scalar_lea.sflag [#allocation5], %s1866
        %s1868 = sand.u32 %s138, 1
        %s1869 = scalar_lea.vmem [#allocation6], %s1868
        // Predicated region
        $region45: #{tpu_custom_call.1} parent=39 // pred_check
          %p1870 = pneg %p148
        $region46: #{tpu_custom_call.1} parent=39 // pred_check_branch
          %1872 = sbr.rel (%p1870) target = $region48
        $region47: #{tpu_custom_call.1} parent=39 // pred_region
          %s1874 = ssub.s32 16, 16
          %1875 = vsyncadd %s1867, %s1874
          %s1876 = smul.addr %s20, 16
          %s1877 = scalar_lea.hbm %s5, %s1876
          %s1879 = sshll.u32 %s1869, 4
          %s1880 = int_to_ptr.vmem [resolvable:$true] %s1879
          %1882 = dma.vmem_to_hbm [thread:$0]  %s1880, 16, %s1877, %s1867
        $region48: #{tpu_custom_call.1} parent=39 // pred_fallthru
          _
      $region40: #{tpu_custom_call.1} parent=5 // pred_fallthru
        _
      %p1883 = scmp.le.s32.totalorder 2, %s15
      // Predicated region
      $region49: #{tpu_custom_call.1} parent=5 // pred_check
        %p1884 = pneg %p1883
      $region50: #{tpu_custom_call.1} parent=5 // pred_check_branch
        %1886 = sbr.rel (%p1884) target = $region52
      $region51: #{tpu_custom_call.1} parent=5 // pred_region
        %s1887 = ssub.s32 %s15, 2
        // Predicated region
        $region53: #{tpu_custom_call.1} parent=51 // pred_check
          %p1888 = pneg %p154
        $region54: #{tpu_custom_call.1} parent=51 // pred_check_branch
          %1890 = sbr.rel (%p1888) target = $region56
        $region55: #{tpu_custom_call.1} parent=51 // pred_region
          %s1891 = sand.u32 %s139, 1
          %s1892 = scalar_lea.sflag [#allocation5], %s1891
          %s1893 = sand.u32 %s139, 1
          %s1894 = scalar_lea.vmem [#allocation6], %s1893
          %1895 = dma.done %s1892, 16
        $region56: #{tpu_custom_call.1} parent=51 // pred_fallthru
          _
      $region52: #{tpu_custom_call.1} parent=5 // pred_fallthru
        _
    $region6: #{tpu_custom_call.1} parent=1 // loop_footer
      %s19 = sadd.s32 1, %s15
    $region7: #{tpu_custom_call.1} parent=1 // loop_footer_branch
      %14 = sbr.rel target = $region3
    $region8: #{tpu_custom_call.1} parent=1 // loop_exit
      _
    %1896 = vsyncpa [#allocation4], 1
    %s1897 = scalar_lea.sflag [#allocation4], 1
    %1898 = vsyncpa %s1897, 1
    %1899 = vsyncpa [#allocation5], 1
    %s1900 = scalar_lea.sflag [#allocation5], 1
    %1901 = vsyncpa %s1900, 1

</llo_original>
